<compile_context>
chip_gen: v6e
topology: v6e:2x2x1
jax: 0.10.0
libtpu: 0.0.40
codegen_flags: <defaults>
</compile_context>

<pallas_src>
import jax
import jax.numpy as jnp
from jax.experimental import pallas as pl
from jax.experimental.pallas import tpu as pltpu


T_BLK = 8  # timesteps processed per grid step


def _round_up(n, m):
    return ((n + m - 1) // m) * m


def _sigmoid(x):
    # Exact identity for sigmoid; uses a single tanh EUP op instead of exp + reciprocal.
    return 0.5 * (jnp.tanh(0.5 * x) + 1.0)


def _lstm_cell(z, c_prev, H):
    """PyTorch gate order [i, f, g, o]; z: (B, 4H) f32, c_prev: (B, H) f32."""
    i = _sigmoid(z[:, 0 * H:1 * H])
    f = _sigmoid(z[:, 1 * H:2 * H])
    g = jnp.tanh(z[:, 2 * H:3 * H])
    o = _sigmoid(z[:, 3 * H:4 * H])
    c = f * c_prev + i * g
    h = o * jnp.tanh(c)
    return h, c


# --------------------------------------------------------------------------
# Fused multi-layer LSTM kernel
# --------------------------------------------------------------------------
def _make_fused_lstm_kernel(num_layers, t_blk, b_pad, hidden):
    H = hidden
    B = b_pad
    n_deep = num_layers - 1

    def kernel(*refs):
        x_ref = refs[0]                                 # (t_blk*B, D)   f32
        wx0_ref, wh0_ref, b0_ref = refs[1], refs[2], refs[3]
        deep_refs = refs[4:4 + 2 * n_deep]              # (w_cat, b) per deep layer
        out_ref = refs[4 + 2 * n_deep]                  # (t_blk*B, H)   f32
        h_scr = refs[5 + 2 * n_deep]                    # (L, B, H)      f32
        c_scr = refs[6 + 2 * n_deep]                    # (L, B, H)      f32

        @pl.when(pl.program_id(0) == 0)
        def _():
            h_scr[...] = jnp.zeros_like(h_scr)
            c_scr[...] = jnp.zeros_like(c_scr)

        # Hoisted layer-0 input projection (+ combined bias) for the whole time block:
        # one (t_blk*B, D) x (D, 4H) MXU matmul instead of t_blk tiny ones on the serial path.
        zx0 = (
            jnp.dot(x_ref[...].astype(jnp.bfloat16), wx0_ref[...],
                    preferred_element_type=jnp.float32)
            + b0_ref[...]
        )

        # Load grid-invariant weights once per block.
        wh0 = wh0_ref[...]
        deep_w = [deep_refs[2 * l][...] for l in range(n_deep)]
        deep_b = [deep_refs[2 * l + 1][...] for l in range(n_deep)]

        # Pull carried state into values; write back once at the end of the block.
        h_state = [h_scr[l] for l in range(num_layers)]
        c_state = [c_scr[l] for l in range(num_layers)]

        for j in range(t_blk):  # statically unrolled inner time loop (static slices)
            # Layer 0: only the recurrent matmul remains inside the recurrence.
            z = zx0[j * B:(j + 1) * B, :] + jnp.dot(
                h_state[0].astype(jnp.bfloat16), wh0,
                preferred_element_type=jnp.float32)
            h_state[0], c_state[0] = _lstm_cell(z, c_state[0], H)
            x_l = h_state[0]

            # Layers >= 1: one fused [x_t, h_{t-1}] @ [W_ih; W_hh] matmul per layer.
            for l in range(n_deep):
                inp = jnp.concatenate([x_l, h_state[l + 1]], axis=-1)
                z = jnp.dot(inp.astype(jnp.bfloat16), deep_w[l],
                            preferred_element_type=jnp.float32) + deep_b[l]
                h_state[l + 1], c_state[l + 1] = _lstm_cell(z, c_state[l + 1], H)
                x_l = h_state[l + 1]

            out_ref[j * B:(j + 1) * B, :] = x_l.astype(out_ref.dtype)

        for l in range(num_layers):
            h_scr[l] = h_state[l]
            c_scr[l] = c_state[l]

    return kernel


def _fused_lstm(x2d, layer0, deep, *, num_layers, t_blk, b_pad, hidden):
    """x2d: (S_pad*B_pad, D) f32; returns last-layer h sequence (S_pad*B_pad, H) f32."""
    SB, D = x2d.shape
    n_blocks = SB // (t_blk * b_pad)
    fourH = 4 * hidden

    wx0, wh0, b0 = layer0
    in_arrays = [x2d, wx0, wh0, b0]
    in_specs = [
        pl.BlockSpec((t_blk * b_pad, D), lambda t: (t, 0)),
        # Weights/biases have constant index maps: they stay resident in VMEM and
        # are not re-fetched per grid step.  (For large H on v7x: use bf16 +
        # pl.Buffered(1) weight specs and raise vmem_limit_bytes.)
        pl.BlockSpec((D, fourH), lambda t: (0, 0)),
        pl.BlockSpec((hidden, fourH), lambda t: (0, 0)),
        pl.BlockSpec((1, fourH), lambda t: (0, 0)),
    ]
    for w_cat, b in deep:
        in_arrays += [w_cat, b]
        in_specs += [
            pl.BlockSpec((2 * hidden, fourH), lambda t: (0, 0)),
            pl.BlockSpec((1, fourH), lambda t: (0, 0)),
        ]

    kernel = _make_fused_lstm_kernel(num_layers, t_blk, b_pad, hidden)

    return pl.pallas_call(
        kernel,
        out_shape=jax.ShapeDtypeStruct((SB, hidden), jnp.float32),
        grid_spec=pltpu.PrefetchScalarGridSpec(
            num_scalar_prefetch=0,
            grid=(n_blocks,),
            in_specs=in_specs,
            out_specs=pl.BlockSpec((t_blk * b_pad, hidden), lambda t: (t, 0)),
            scratch_shapes=[
                pltpu.VMEM((num_layers, b_pad, hidden), jnp.float32),  # h state
                pltpu.VMEM((num_layers, b_pad, hidden), jnp.float32),  # c state
            ],
        ),
        # The time axis carries h/c state -> must stay "arbitrary" (sequential).
        compiler_params=pltpu.CompilerParams(
            dimension_semantics=("arbitrary",),
        ),
    )(*in_arrays)


# --------------------------------------------------------------------------
# Parameters: PyTorch-layout init + one-time kernel-layout preparation
# --------------------------------------------------------------------------
def init_params(key, num_layers, input_size, hidden_size):
    """Deterministic init matching PyTorch shapes: uniform(-1/sqrt(H), 1/sqrt(H))."""
    bound = 1.0 / jnp.sqrt(hidden_size)
    params = {"layers": []}
    for layer in range(num_layers):
        d_in = input_size if layer == 0 else hidden_size
        key, k1, k2, k3, k4 = jax.random.split(key, 5)
        w_ih = jax.random.uniform(k1, (4 * hidden_size, d_in), jnp.float32, -bound, bound)
        w_hh = jax.random.uniform(k2, (4 * hidden_size, hidden_size), jnp.float32, -bound, bound)
        b_ih = jax.random.uniform(k3, (4 * hidden_size,), jnp.float32, -bound, bound)
        b_hh = jax.random.uniform(k4, (4 * hidden_size,), jnp.float32, -bound, bound)
        params["layers"].append((w_ih, w_hh, b_ih, b_hh))
    key, k1, k2 = jax.random.split(key, 3)
    params["fc_w"] = jax.random.uniform(k1, (1, hidden_size), jnp.float32, -bound, bound)
    params["fc_b"] = jax.random.uniform(k2, (1,), jnp.float32, -bound, bound)
    return params


def prepare_params(raw):
    """One-time conversion to kernel layout: pre-transpose, pre-sum biases, cast to bf16."""
    w_ih0, w_hh0, b_ih0, b_hh0 = raw["layers"][0]
    layer0 = (
        jnp.transpose(w_ih0).astype(jnp.bfloat16),        # (D, 4H)
        jnp.transpose(w_hh0).astype(jnp.bfloat16),        # (H, 4H)
        (b_ih0 + b_hh0)[None, :].astype(jnp.float32),     # (1, 4H)
    )
    deep = []
    for (w_ih, w_hh, b_ih, b_hh) in raw["layers"][1:]:
        w_cat = jnp.concatenate(
            [jnp.transpose(w_ih), jnp.transpose(w_hh)], axis=0
        ).astype(jnp.bfloat16)                            # (2H, 4H)
        deep.append((w_cat, (b_ih + b_hh)[None, :].astype(jnp.float32)))
    return {
        "layer0": layer0,
        "deep": tuple(deep),
        "fc_w_t": jnp.transpose(raw["fc_w"]).astype(jnp.float32),  # (H, 1)
        "fc_b": raw["fc_b"].astype(jnp.float32),
    }


# --------------------------------------------------------------------------
# Forward
# --------------------------------------------------------------------------
def _forward_impl(x, params):
    """x: (S, B, input_size) -> (S, B, 1)."""
    S, B, D = x.shape
    H = params["layer0"][1].shape[0]
    num_layers = 1 + len(params["deep"])

    b_pad = _round_up(B, 8)        # sublane alignment
    s_pad = _round_up(S, T_BLK)    # whole number of time blocks
    x_p = jnp.pad(x, ((0, s_pad - S), (0, b_pad - B), (0, 0)))
    x2d = x_p.reshape(s_pad * b_pad, D)

    h2d = _fused_lstm(x2d, params["layer0"], params["deep"],
                      num_layers=num_layers, t_blk=T_BLK, b_pad=b_pad, hidden=H)
    h = h2d.reshape(s_pad, b_pad, H)[:S, :B, :]

    # Final Linear(hidden, 1): width-1 output -> leave to XLA (a Pallas matmul here
    # would waste 127/128 MXU output columns and add pure launch overhead).
    return h @ params["fc_w_t"] + params["fc_b"]


lstm_model_forward = jax.jit(_forward_impl)


# --------------------------------------------------------------------------
# Pure-JAX f32 reference (PyTorch semantics) for a sanity check
# --------------------------------------------------------------------------
def lstm_model_reference(x, raw):
    h_seq = x
    for (w_ih, w_hh, b_ih, b_hh) in raw["layers"]:
        S, B, _ = h_seq.shape
        H = w_hh.shape[1]
        h = jnp.zeros((B, H), jnp.float32)
        c = jnp.zeros((B, H), jnp.float32)
        outs = []
        for t in range(S):
            z = h_seq[t] @ w_ih.T + h @ w_hh.T + b_ih + b_hh
            i = jax.nn.sigmoid(z[:, 0 * H:1 * H])
            f = jax.nn.sigmoid(z[:, 1 * H:2 * H])
            g = jnp.tanh(z[:, 2 * H:3 * H])
            o = jax.nn.sigmoid(z[:, 3 * H:4 * H])
            c = f * c + i * g
            h = o * jnp.tanh(c)
            outs.append(h)
        h_seq = jnp.stack(outs, axis=0)
    return h_seq @ raw["fc_w"].T + raw["fc_b"]


if __name__ == "__main__":
    num_layers, input_size, hidden_size = 2, 16, 32
    seq_len, batch = 12, 4   # exercises time-block padding (T_BLK=8 -> 2 grid steps)

    key = jax.random.PRNGKey(0)
    key, kx = jax.random.split(key)
    x = jax.random.normal(kx, (seq_len, batch, input_size), jnp.float32)
    raw_params = init_params(key, num_layers, input_size, hidden_size)
    params = prepare_params(raw_params)

    out = jax.block_until_ready(lstm_model_forward(x, params))

    ref = lstm_model_reference(x, raw_params)
    assert out.shape == (seq_len, batch, 1)
    # bf16 weights on the MXU (f32 accumulation) -> compare against the f32
    # reference with a loosened tolerance, as flagged in the perf review.
    max_err = float(jnp.max(jnp.abs(out - ref)))
    assert jnp.allclose(out, ref, atol=2.5e-2, rtol=2.5e-2), f"mismatch vs reference: max|d|={max_err}"

    print("KERNEL_OK")
</pallas_src>

<mosaic_0001>
module attributes {stable_mosaic.version = 11 : i64} {
  func.func @kernel(%arg0: i32, %arg1: memref<64x16xf32, #tpu.memory_space<vmem>>, %arg2: memref<16x128xbf16, #tpu.memory_space<vmem>>, %arg3: memref<32x128xbf16, #tpu.memory_space<vmem>>, %arg4: memref<1x128xf32, #tpu.memory_space<vmem>>, %arg5: memref<64x128xbf16, #tpu.memory_space<vmem>>, %arg6: memref<1x128xf32, #tpu.memory_space<vmem>>, %arg7: memref<64x32xf32, #tpu.memory_space<vmem>>, %arg8: memref<2x8x32xf32, #tpu.memory_space<vmem>>, %arg9: memref<2x8x32xf32, #tpu.memory_space<vmem>>) attributes {dimension_semantics = [#tpu.dimension_semantics<arbitrary>], iteration_bounds = array<i64: 2>, scalar_prefetch = 0 : i64, scratch_operands = 2 : i64, tpu.core_type = #tpu.core_type<tc>, window_params = [{transform_indices = @transform_0, window_bounds = array<i64: 64, 16>}, {pipeline_mode = #tpu.pipeline_mode<synchronous>, transform_indices = @transform_1, window_bounds = array<i64: 16, 128>}, {pipeline_mode = #tpu.pipeline_mode<synchronous>, transform_indices = @transform_2, window_bounds = array<i64: 32, 128>}, {pipeline_mode = #tpu.pipeline_mode<synchronous>, transform_indices = @transform_3, window_bounds = array<i64: 1, 128>}, {pipeline_mode = #tpu.pipeline_mode<synchronous>, transform_indices = @transform_4, window_bounds = array<i64: 64, 128>}, {pipeline_mode = #tpu.pipeline_mode<synchronous>, transform_indices = @transform_5, window_bounds = array<i64: 1, 128>}, {transform_indices = @transform_6, window_bounds = array<i64: 64, 32>}]} {
    %c0_i32 = arith.constant 0 : i32
    %0 = arith.cmpi eq, %arg0, %c0_i32 : i32
    %1 = arith.extui %0 : i1 to i32
    %c0_i32_0 = arith.constant 0 : i32
    %2 = arith.cmpi ne, %1, %c0_i32_0 : i32
    scf.if %2 {
      %cst_204 = arith.constant 0.000000e+00 : f32
      %609 = vector.broadcast %cst_204 : f32 to vector<2x8x32xf32>
      %c0_205 = arith.constant 0 : index
      %c0_206 = arith.constant 0 : index
      %c0_207 = arith.constant 0 : index
      %610 = vector.load %arg8[%c0_205, %c0_206, %c0_207] : memref<2x8x32xf32, #tpu.memory_space<vmem>>, vector<2x8x32xf32>
      tpu.vector_store %arg8[%c0_205, %c0_206, %c0_207], %609 {strides = array<i32>} : memref<2x8x32xf32, #tpu.memory_space<vmem>>, vector<2x8x32xf32>,
      %cst_208 = arith.constant 0.000000e+00 : f32
      %611 = vector.broadcast %cst_208 : f32 to vector<2x8x32xf32>
      %c0_209 = arith.constant 0 : index
      %c0_210 = arith.constant 0 : index
      %c0_211 = arith.constant 0 : index
      %612 = vector.load %arg9[%c0_209, %c0_210, %c0_211] : memref<2x8x32xf32, #tpu.memory_space<vmem>>, vector<2x8x32xf32>
      tpu.vector_store %arg9[%c0_209, %c0_210, %c0_211], %611 {strides = array<i32>} : memref<2x8x32xf32, #tpu.memory_space<vmem>>, vector<2x8x32xf32>,
    } else {
    }
    %c0 = arith.constant 0 : index
    %c0_1 = arith.constant 0 : index
    %3 = vector.load %arg1[%c0, %c0_1] : memref<64x16xf32, #tpu.memory_space<vmem>>, vector<64x16xf32>
    %4 = arith.truncf %3 : vector<64x16xf32> to vector<64x16xbf16>
    %c0_2 = arith.constant 0 : index
    %c0_3 = arith.constant 0 : index
    %5 = vector.load %arg2[%c0_2, %c0_3] : memref<16x128xbf16, #tpu.memory_space<vmem>>, vector<16x128xbf16>
    %cst = arith.constant dense<0.000000e+00> : vector<64x128xf32>
    %6 = tpu.matmul %4, %5, %cst {dimension_numbers = #tpu.dot_dimension_numbers<[1], [0], [0], [1], [0, 0, 1, 1], [], []>} : vector<64x16xbf16>, vector<16x128xbf16>, vector<64x128xf32> -> vector<64x128xf32>
    %c0_4 = arith.constant 0 : index
    %c0_5 = arith.constant 0 : index
    %7 = vector.load %arg4[%c0_4, %c0_5] : memref<1x128xf32, #tpu.memory_space<vmem>>, vector<1x128xf32>
    %8 = vector.broadcast %7 : vector<1x128xf32> to vector<64x128xf32>
    %9 = arith.addf %6, %8 : vector<64x128xf32>
    %c0_6 = arith.constant 0 : index
    %c0_7 = arith.constant 0 : index
    %10 = vector.load %arg3[%c0_6, %c0_7] : memref<32x128xbf16, #tpu.memory_space<vmem>>, vector<32x128xbf16>
    %c0_8 = arith.constant 0 : index
    %c0_9 = arith.constant 0 : index
    %11 = vector.load %arg5[%c0_8, %c0_9] : memref<64x128xbf16, #tpu.memory_space<vmem>>, vector<64x128xbf16>
    %c0_10 = arith.constant 0 : index
    %c0_11 = arith.constant 0 : index
    %12 = vector.load %arg6[%c0_10, %c0_11] : memref<1x128xf32, #tpu.memory_space<vmem>>, vector<1x128xf32>
    %c0_12 = arith.constant 0 : index
    %c0_13 = arith.constant 0 : index
    %c0_14 = arith.constant 0 : index
    %13 = vector.load %arg8[%c0_12, %c0_13, %c0_14] : memref<2x8x32xf32, #tpu.memory_space<vmem>>, vector<1x8x32xf32>
    %14 = vector.shape_cast %13 : vector<1x8x32xf32> to vector<8x32xf32>
    %c1 = arith.constant 1 : index
    %c0_15 = arith.constant 0 : index
    %c0_16 = arith.constant 0 : index
    %15 = vector.load %arg8[%c1, %c0_15, %c0_16] : memref<2x8x32xf32, #tpu.memory_space<vmem>>, vector<1x8x32xf32>
    %16 = vector.shape_cast %15 : vector<1x8x32xf32> to vector<8x32xf32>
    %c0_17 = arith.constant 0 : index
    %c0_18 = arith.constant 0 : index
    %c0_19 = arith.constant 0 : index
    %17 = vector.load %arg9[%c0_17, %c0_18, %c0_19] : memref<2x8x32xf32, #tpu.memory_space<vmem>>, vector<1x8x32xf32>
    %18 = vector.shape_cast %17 : vector<1x8x32xf32> to vector<8x32xf32>
    %c1_20 = arith.constant 1 : index
    %c0_21 = arith.constant 0 : index
    %c0_22 = arith.constant 0 : index
    %19 = vector.load %arg9[%c1_20, %c0_21, %c0_22] : memref<2x8x32xf32, #tpu.memory_space<vmem>>, vector<1x8x32xf32>
    %20 = vector.shape_cast %19 : vector<1x8x32xf32> to vector<8x32xf32>
    %21 = vector.extract_strided_slice %9 {offsets = [0, 0], sizes = [8, 128], strides = [1, 1]} : vector<64x128xf32> to vector<8x128xf32>
    %22 = arith.truncf %14 : vector<8x32xf32> to vector<8x32xbf16>
    %cst_23 = arith.constant dense<0.000000e+00> : vector<8x128xf32>
    %23 = tpu.matmul %22, %10, %cst_23 {dimension_numbers = #tpu.dot_dimension_numbers<[1], [0], [0], [1], [0, 0, 1, 1], [], []>} : vector<8x32xbf16>, vector<32x128xbf16>, vector<8x128xf32> -> vector<8x128xf32>
    %24 = arith.addf %21, %23 : vector<8x128xf32>
    %25 = vector.extract_strided_slice %24 {offsets = [0, 0], sizes = [8, 32], strides = [1, 1]} : vector<8x128xf32> to vector<8x32xf32>
    %cst_24 = arith.constant 5.000000e-01 : f32
    %26 = vector.broadcast %cst_24 : f32 to vector<8x32xf32>
    %27 = arith.mulf %26, %25 : vector<8x32xf32>
    %28 = math.tanh %27 : vector<8x32xf32>
    %cst_25 = arith.constant 1.000000e+00 : f32
    %29 = vector.broadcast %cst_25 : f32 to vector<8x32xf32>
    %30 = arith.addf %28, %29 : vector<8x32xf32>
    %cst_26 = arith.constant 5.000000e-01 : f32
    %31 = vector.broadcast %cst_26 : f32 to vector<8x32xf32>
    %32 = arith.mulf %31, %30 : vector<8x32xf32>
    %33 = vector.extract_strided_slice %24 {offsets = [0, 32], sizes = [8, 32], strides = [1, 1]} : vector<8x128xf32> to vector<8x32xf32>
    %cst_27 = arith.constant 5.000000e-01 : f32
    %34 = vector.broadcast %cst_27 : f32 to vector<8x32xf32>
    %35 = arith.mulf %34, %33 : vector<8x32xf32>
    %36 = math.tanh %35 : vector<8x32xf32>
    %cst_28 = arith.constant 1.000000e+00 : f32
    %37 = vector.broadcast %cst_28 : f32 to vector<8x32xf32>
    %38 = arith.addf %36, %37 : vector<8x32xf32>
    %cst_29 = arith.constant 5.000000e-01 : f32
    %39 = vector.broadcast %cst_29 : f32 to vector<8x32xf32>
    %40 = arith.mulf %39, %38 : vector<8x32xf32>
    %41 = vector.extract_strided_slice %24 {offsets = [0, 64], sizes = [8, 32], strides = [1, 1]} : vector<8x128xf32> to vector<8x32xf32>
    %42 = math.tanh %41 : vector<8x32xf32>
    %43 = vector.extract_strided_slice %24 {offsets = [0, 96], sizes = [8, 32], strides = [1, 1]} : vector<8x128xf32> to vector<8x32xf32>
    %cst_30 = arith.constant 5.000000e-01 : f32
    %44 = vector.broadcast %cst_30 : f32 to vector<8x32xf32>
    %45 = arith.mulf %44, %43 : vector<8x32xf32>
    %46 = math.tanh %45 : vector<8x32xf32>
    %cst_31 = arith.constant 1.000000e+00 : f32
    %47 = vector.broadcast %cst_31 : f32 to vector<8x32xf32>
    %48 = arith.addf %46, %47 : vector<8x32xf32>
    %cst_32 = arith.constant 5.000000e-01 : f32
    %49 = vector.broadcast %cst_32 : f32 to vector<8x32xf32>
    %50 = arith.mulf %49, %48 : vector<8x32xf32>
    %51 = arith.mulf %40, %18 : vector<8x32xf32>
    %52 = arith.mulf %32, %42 : vector<8x32xf32>
    %53 = arith.addf %51, %52 : vector<8x32xf32>
    %54 = math.tanh %53 : vector<8x32xf32>
    %55 = arith.mulf %50, %54 : vector<8x32xf32>
    %56 = tpu.concatenate %55, %16 in 1 : vector<8x32xf32>, vector<8x32xf32> -> vector<8x64xf32>
    %57 = arith.truncf %56 : vector<8x64xf32> to vector<8x64xbf16>
    %cst_33 = arith.constant dense<0.000000e+00> : vector<8x128xf32>
    %58 = tpu.matmul %57, %11, %cst_33 {dimension_numbers = #tpu.dot_dimension_numbers<[1], [0], [0], [1], [0, 0, 1, 1], [], []>} : vector<8x64xbf16>, vector<64x128xbf16>, vector<8x128xf32> -> vector<8x128xf32>
    %59 = vector.broadcast %12 : vector<1x128xf32> to vector<8x128xf32>
    %60 = arith.addf %58, %59 : vector<8x128xf32>
    %61 = vector.extract_strided_slice %60 {offsets = [0, 0], sizes = [8, 32], strides = [1, 1]} : vector<8x128xf32> to vector<8x32xf32>
    %cst_34 = arith.constant 5.000000e-01 : f32
    %62 = vector.broadcast %cst_34 : f32 to vector<8x32xf32>
    %63 = arith.mulf %62, %61 : vector<8x32xf32>
    %64 = math.tanh %63 : vector<8x32xf32>
    %cst_35 = arith.constant 1.000000e+00 : f32
    %65 = vector.broadcast %cst_35 : f32 to vector<8x32xf32>
    %66 = arith.addf %64, %65 : vector<8x32xf32>
    %cst_36 = arith.constant 5.000000e-01 : f32
    %67 = vector.broadcast %cst_36 : f32 to vector<8x32xf32>
    %68 = arith.mulf %67, %66 : vector<8x32xf32>
    %69 = vector.extract_strided_slice %60 {offsets = [0, 32], sizes = [8, 32], strides = [1, 1]} : vector<8x128xf32> to vector<8x32xf32>
    %cst_37 = arith.constant 5.000000e-01 : f32
    %70 = vector.broadcast %cst_37 : f32 to vector<8x32xf32>
    %71 = arith.mulf %70, %69 : vector<8x32xf32>
    %72 = math.tanh %71 : vector<8x32xf32>
    %cst_38 = arith.constant 1.000000e+00 : f32
    %73 = vector.broadcast %cst_38 : f32 to vector<8x32xf32>
    %74 = arith.addf %72, %73 : vector<8x32xf32>
    %cst_39 = arith.constant 5.000000e-01 : f32
    %75 = vector.broadcast %cst_39 : f32 to vector<8x32xf32>
    %76 = arith.mulf %75, %74 : vector<8x32xf32>
    %77 = vector.extract_strided_slice %60 {offsets = [0, 64], sizes = [8, 32], strides = [1, 1]} : vector<8x128xf32> to vector<8x32xf32>
    %78 = math.tanh %77 : vector<8x32xf32>
    %79 = vector.extract_strided_slice %60 {offsets = [0, 96], sizes = [8, 32], strides = [1, 1]} : vector<8x128xf32> to vector<8x32xf32>
    %cst_40 = arith.constant 5.000000e-01 : f32
    %80 = vector.broadcast %cst_40 : f32 to vector<8x32xf32>
    %81 = arith.mulf %80, %79 : vector<8x32xf32>
    %82 = math.tanh %81 : vector<8x32xf32>
    %cst_41 = arith.constant 1.000000e+00 : f32
    %83 = vector.broadcast %cst_41 : f32 to vector<8x32xf32>
    %84 = arith.addf %82, %83 : vector<8x32xf32>
    %cst_42 = arith.constant 5.000000e-01 : f32
    %85 = vector.broadcast %cst_42 : f32 to vector<8x32xf32>
    %86 = arith.mulf %85, %84 : vector<8x32xf32>
    %87 = arith.mulf %76, %20 : vector<8x32xf32>
    %88 = arith.mulf %68, %78 : vector<8x32xf32>
    %89 = arith.addf %87, %88 : vector<8x32xf32>
    %90 = math.tanh %89 : vector<8x32xf32>
    %91 = arith.mulf %86, %90 : vector<8x32xf32>
    %c0_43 = arith.constant 0 : index
    %c0_44 = arith.constant 0 : index
    %92 = vector.load %arg7[%c0_43, %c0_44] : memref<64x32xf32, #tpu.memory_space<vmem>>, vector<8x32xf32>
    tpu.vector_store %arg7[%c0_43, %c0_44], %91 {strides = array<i32>} : memref<64x32xf32, #tpu.memory_space<vmem>>, vector<8x32xf32>,
    %93 = vector.extract_strided_slice %9 {offsets = [8, 0], sizes = [8, 128], strides = [1, 1]} : vector<64x128xf32> to vector<8x128xf32>
    %94 = arith.truncf %55 : vector<8x32xf32> to vector<8x32xbf16>
    %cst_45 = arith.constant dense<0.000000e+00> : vector<8x128xf32>
    %95 = tpu.matmul %94, %10, %cst_45 {dimension_numbers = #tpu.dot_dimension_numbers<[1], [0], [0], [1], [0, 0, 1, 1], [], []>} : vector<8x32xbf16>, vector<32x128xbf16>, vector<8x128xf32> -> vector<8x128xf32>
    %96 = arith.addf %93, %95 : vector<8x128xf32>
    %97 = vector.extract_strided_slice %96 {offsets = [0, 0], sizes = [8, 32], strides = [1, 1]} : vector<8x128xf32> to vector<8x32xf32>
    %cst_46 = arith.constant 5.000000e-01 : f32
    %98 = vector.broadcast %cst_46 : f32 to vector<8x32xf32>
    %99 = arith.mulf %98, %97 : vector<8x32xf32>
    %100 = math.tanh %99 : vector<8x32xf32>
    %cst_47 = arith.constant 1.000000e+00 : f32
    %101 = vector.broadcast %cst_47 : f32 to vector<8x32xf32>
    %102 = arith.addf %100, %101 : vector<8x32xf32>
    %cst_48 = arith.constant 5.000000e-01 : f32
    %103 = vector.broadcast %cst_48 : f32 to vector<8x32xf32>
    %104 = arith.mulf %103, %102 : vector<8x32xf32>
    %105 = vector.extract_strided_slice %96 {offsets = [0, 32], sizes = [8, 32], strides = [1, 1]} : vector<8x128xf32> to vector<8x32xf32>
    %cst_49 = arith.constant 5.000000e-01 : f32
    %106 = vector.broadcast %cst_49 : f32 to vector<8x32xf32>
    %107 = arith.mulf %106, %105 : vector<8x32xf32>
    %108 = math.tanh %107 : vector<8x32xf32>
    %cst_50 = arith.constant 1.000000e+00 : f32
    %109 = vector.broadcast %cst_50 : f32 to vector<8x32xf32>
    %110 = arith.addf %108, %109 : vector<8x32xf32>
    %cst_51 = arith.constant 5.000000e-01 : f32
    %111 = vector.broadcast %cst_51 : f32 to vector<8x32xf32>
    %112 = arith.mulf %111, %110 : vector<8x32xf32>
    %113 = vector.extract_strided_slice %96 {offsets = [0, 64], sizes = [8, 32], strides = [1, 1]} : vector<8x128xf32> to vector<8x32xf32>
    %114 = math.tanh %113 : vector<8x32xf32>
    %115 = vector.extract_strided_slice %96 {offsets = [0, 96], sizes = [8, 32], strides = [1, 1]} : vector<8x128xf32> to vector<8x32xf32>
    %cst_52 = arith.constant 5.000000e-01 : f32
    %116 = vector.broadcast %cst_52 : f32 to vector<8x32xf32>
    %117 = arith.mulf %116, %115 : vector<8x32xf32>
    %118 = math.tanh %117 : vector<8x32xf32>
    %cst_53 = arith.constant 1.000000e+00 : f32
    %119 = vector.broadcast %cst_53 : f32 to vector<8x32xf32>
    %120 = arith.addf %118, %119 : vector<8x32xf32>
    %cst_54 = arith.constant 5.000000e-01 : f32
    %121 = vector.broadcast %cst_54 : f32 to vector<8x32xf32>
    %122 = arith.mulf %121, %120 : vector<8x32xf32>
    %123 = arith.mulf %112, %53 : vector<8x32xf32>
    %124 = arith.mulf %104, %114 : vector<8x32xf32>
    %125 = arith.addf %123, %124 : vector<8x32xf32>
    %126 = math.tanh %125 : vector<8x32xf32>
    %127 = arith.mulf %122, %126 : vector<8x32xf32>
    %128 = tpu.concatenate %127, %91 in 1 : vector<8x32xf32>, vector<8x32xf32> -> vector<8x64xf32>
    %129 = arith.truncf %128 : vector<8x64xf32> to vector<8x64xbf16>
    %cst_55 = arith.constant dense<0.000000e+00> : vector<8x128xf32>
    %130 = tpu.matmul %129, %11, %cst_55 {dimension_numbers = #tpu.dot_dimension_numbers<[1], [0], [0], [1], [0, 0, 1, 1], [], []>} : vector<8x64xbf16>, vector<64x128xbf16>, vector<8x128xf32> -> vector<8x128xf32>
    %131 = vector.broadcast %12 : vector<1x128xf32> to vector<8x128xf32>
    %132 = arith.addf %130, %131 : vector<8x128xf32>
    %133 = vector.extract_strided_slice %132 {offsets = [0, 0], sizes = [8, 32], strides = [1, 1]} : vector<8x128xf32> to vector<8x32xf32>
    %cst_56 = arith.constant 5.000000e-01 : f32
    %134 = vector.broadcast %cst_56 : f32 to vector<8x32xf32>
    %135 = arith.mulf %134, %133 : vector<8x32xf32>
    %136 = math.tanh %135 : vector<8x32xf32>
    %cst_57 = arith.constant 1.000000e+00 : f32
    %137 = vector.broadcast %cst_57 : f32 to vector<8x32xf32>
    %138 = arith.addf %136, %137 : vector<8x32xf32>
    %cst_58 = arith.constant 5.000000e-01 : f32
    %139 = vector.broadcast %cst_58 : f32 to vector<8x32xf32>
    %140 = arith.mulf %139, %138 : vector<8x32xf32>
    %141 = vector.extract_strided_slice %132 {offsets = [0, 32], sizes = [8, 32], strides = [1, 1]} : vector<8x128xf32> to vector<8x32xf32>
    %cst_59 = arith.constant 5.000000e-01 : f32
    %142 = vector.broadcast %cst_59 : f32 to vector<8x32xf32>
    %143 = arith.mulf %142, %141 : vector<8x32xf32>
    %144 = math.tanh %143 : vector<8x32xf32>
    %cst_60 = arith.constant 1.000000e+00 : f32
    %145 = vector.broadcast %cst_60 : f32 to vector<8x32xf32>
    %146 = arith.addf %144, %145 : vector<8x32xf32>
    %cst_61 = arith.constant 5.000000e-01 : f32
    %147 = vector.broadcast %cst_61 : f32 to vector<8x32xf32>
    %148 = arith.mulf %147, %146 : vector<8x32xf32>
    %149 = vector.extract_strided_slice %132 {offsets = [0, 64], sizes = [8, 32], strides = [1, 1]} : vector<8x128xf32> to vector<8x32xf32>
    %150 = math.tanh %149 : vector<8x32xf32>
    %151 = vector.extract_strided_slice %132 {offsets = [0, 96], sizes = [8, 32], strides = [1, 1]} : vector<8x128xf32> to vector<8x32xf32>
    %cst_62 = arith.constant 5.000000e-01 : f32
    %152 = vector.broadcast %cst_62 : f32 to vector<8x32xf32>
    %153 = arith.mulf %152, %151 : vector<8x32xf32>
    %154 = math.tanh %153 : vector<8x32xf32>
    %cst_63 = arith.constant 1.000000e+00 : f32
    %155 = vector.broadcast %cst_63 : f32 to vector<8x32xf32>
    %156 = arith.addf %154, %155 : vector<8x32xf32>
    %cst_64 = arith.constant 5.000000e-01 : f32
    %157 = vector.broadcast %cst_64 : f32 to vector<8x32xf32>
    %158 = arith.mulf %157, %156 : vector<8x32xf32>
    %159 = arith.mulf %148, %89 : vector<8x32xf32>
    %160 = arith.mulf %140, %150 : vector<8x32xf32>
    %161 = arith.addf %159, %160 : vector<8x32xf32>
    %162 = math.tanh %161 : vector<8x32xf32>
    %163 = arith.mulf %158, %162 : vector<8x32xf32>
    %c8 = arith.constant 8 : index
    %c0_65 = arith.constant 0 : index
    %164 = vector.load %arg7[%c8, %c0_65] : memref<64x32xf32, #tpu.memory_space<vmem>>, vector<8x32xf32>
    tpu.vector_store %arg7[%c8, %c0_65], %163 {strides = array<i32>} : memref<64x32xf32, #tpu.memory_space<vmem>>, vector<8x32xf32>,
    %165 = vector.extract_strided_slice %9 {offsets = [16, 0], sizes = [8, 128], strides = [1, 1]} : vector<64x128xf32> to vector<8x128xf32>
    %166 = arith.truncf %127 : vector<8x32xf32> to vector<8x32xbf16>
    %cst_66 = arith.constant dense<0.000000e+00> : vector<8x128xf32>
    %167 = tpu.matmul %166, %10, %cst_66 {dimension_numbers = #tpu.dot_dimension_numbers<[1], [0], [0], [1], [0, 0, 1, 1], [], []>} : vector<8x32xbf16>, vector<32x128xbf16>, vector<8x128xf32> -> vector<8x128xf32>
    %168 = arith.addf %165, %167 : vector<8x128xf32>
    %169 = vector.extract_strided_slice %168 {offsets = [0, 0], sizes = [8, 32], strides = [1, 1]} : vector<8x128xf32> to vector<8x32xf32>
    %cst_67 = arith.constant 5.000000e-01 : f32
    %170 = vector.broadcast %cst_67 : f32 to vector<8x32xf32>
    %171 = arith.mulf %170, %169 : vector<8x32xf32>
    %172 = math.tanh %171 : vector<8x32xf32>
    %cst_68 = arith.constant 1.000000e+00 : f32
    %173 = vector.broadcast %cst_68 : f32 to vector<8x32xf32>
    %174 = arith.addf %172, %173 : vector<8x32xf32>
    %cst_69 = arith.constant 5.000000e-01 : f32
    %175 = vector.broadcast %cst_69 : f32 to vector<8x32xf32>
    %176 = arith.mulf %175, %174 : vector<8x32xf32>
    %177 = vector.extract_strided_slice %168 {offsets = [0, 32], sizes = [8, 32], strides = [1, 1]} : vector<8x128xf32> to vector<8x32xf32>
    %cst_70 = arith.constant 5.000000e-01 : f32
    %178 = vector.broadcast %cst_70 : f32 to vector<8x32xf32>
    %179 = arith.mulf %178, %177 : vector<8x32xf32>
    %180 = math.tanh %179 : vector<8x32xf32>
    %cst_71 = arith.constant 1.000000e+00 : f32
    %181 = vector.broadcast %cst_71 : f32 to vector<8x32xf32>
    %182 = arith.addf %180, %181 : vector<8x32xf32>
    %cst_72 = arith.constant 5.000000e-01 : f32
    %183 = vector.broadcast %cst_72 : f32 to vector<8x32xf32>
    %184 = arith.mulf %183, %182 : vector<8x32xf32>
    %185 = vector.extract_strided_slice %168 {offsets = [0, 64], sizes = [8, 32], strides = [1, 1]} : vector<8x128xf32> to vector<8x32xf32>
    %186 = math.tanh %185 : vector<8x32xf32>
    %187 = vector.extract_strided_slice %168 {offsets = [0, 96], sizes = [8, 32], strides = [1, 1]} : vector<8x128xf32> to vector<8x32xf32>
    %cst_73 = arith.constant 5.000000e-01 : f32
    %188 = vector.broadcast %cst_73 : f32 to vector<8x32xf32>
    %189 = arith.mulf %188, %187 : vector<8x32xf32>
    %190 = math.tanh %189 : vector<8x32xf32>
    %cst_74 = arith.constant 1.000000e+00 : f32
    %191 = vector.broadcast %cst_74 : f32 to vector<8x32xf32>
    %192 = arith.addf %190, %191 : vector<8x32xf32>
    %cst_75 = arith.constant 5.000000e-01 : f32
    %193 = vector.broadcast %cst_75 : f32 to vector<8x32xf32>
    %194 = arith.mulf %193, %192 : vector<8x32xf32>
    %195 = arith.mulf %184, %125 : vector<8x32xf32>
    %196 = arith.mulf %176, %186 : vector<8x32xf32>
    %197 = arith.addf %195, %196 : vector<8x32xf32>
    %198 = math.tanh %197 : vector<8x32xf32>
    %199 = arith.mulf %194, %198 : vector<8x32xf32>
    %200 = tpu.concatenate %199, %163 in 1 : vector<8x32xf32>, vector<8x32xf32> -> vector<8x64xf32>
    %201 = arith.truncf %200 : vector<8x64xf32> to vector<8x64xbf16>
    %cst_76 = arith.constant dense<0.000000e+00> : vector<8x128xf32>
    %202 = tpu.matmul %201, %11, %cst_76 {dimension_numbers = #tpu.dot_dimension_numbers<[1], [0], [0], [1], [0, 0, 1, 1], [], []>} : vector<8x64xbf16>, vector<64x128xbf16>, vector<8x128xf32> -> vector<8x128xf32>
    %203 = vector.broadcast %12 : vector<1x128xf32> to vector<8x128xf32>
    %204 = arith.addf %202, %203 : vector<8x128xf32>
    %205 = vector.extract_strided_slice %204 {offsets = [0, 0], sizes = [8, 32], strides = [1, 1]} : vector<8x128xf32> to vector<8x32xf32>
    %cst_77 = arith.constant 5.000000e-01 : f32
    %206 = vector.broadcast %cst_77 : f32 to vector<8x32xf32>
    %207 = arith.mulf %206, %205 : vector<8x32xf32>
    %208 = math.tanh %207 : vector<8x32xf32>
    %cst_78 = arith.constant 1.000000e+00 : f32
    %209 = vector.broadcast %cst_78 : f32 to vector<8x32xf32>
    %210 = arith.addf %208, %209 : vector<8x32xf32>
    %cst_79 = arith.constant 5.000000e-01 : f32
    %211 = vector.broadcast %cst_79 : f32 to vector<8x32xf32>
    %212 = arith.mulf %211, %210 : vector<8x32xf32>
    %213 = vector.extract_strided_slice %204 {offsets = [0, 32], sizes = [8, 32], strides = [1, 1]} : vector<8x128xf32> to vector<8x32xf32>
    %cst_80 = arith.constant 5.000000e-01 : f32
    %214 = vector.broadcast %cst_80 : f32 to vector<8x32xf32>
    %215 = arith.mulf %214, %213 : vector<8x32xf32>
    %216 = math.tanh %215 : vector<8x32xf32>
    %cst_81 = arith.constant 1.000000e+00 : f32
    %217 = vector.broadcast %cst_81 : f32 to vector<8x32xf32>
    %218 = arith.addf %216, %217 : vector<8x32xf32>
    %cst_82 = arith.constant 5.000000e-01 : f32
    %219 = vector.broadcast %cst_82 : f32 to vector<8x32xf32>
    %220 = arith.mulf %219, %218 : vector<8x32xf32>
    %221 = vector.extract_strided_slice %204 {offsets = [0, 64], sizes = [8, 32], strides = [1, 1]} : vector<8x128xf32> to vector<8x32xf32>
    %222 = math.tanh %221 : vector<8x32xf32>
    %223 = vector.extract_strided_slice %204 {offsets = [0, 96], sizes = [8, 32], strides = [1, 1]} : vector<8x128xf32> to vector<8x32xf32>
    %cst_83 = arith.constant 5.000000e-01 : f32
    %224 = vector.broadcast %cst_83 : f32 to vector<8x32xf32>
    %225 = arith.mulf %224, %223 : vector<8x32xf32>
    %226 = math.tanh %225 : vector<8x32xf32>
    %cst_84 = arith.constant 1.000000e+00 : f32
    %227 = vector.broadcast %cst_84 : f32 to vector<8x32xf32>
    %228 = arith.addf %226, %227 : vector<8x32xf32>
    %cst_85 = arith.constant 5.000000e-01 : f32
    %229 = vector.broadcast %cst_85 : f32 to vector<8x32xf32>
    %230 = arith.mulf %229, %228 : vector<8x32xf32>
    %231 = arith.mulf %220, %161 : vector<8x32xf32>
    %232 = arith.mulf %212, %222 : vector<8x32xf32>
    %233 = arith.addf %231, %232 : vector<8x32xf32>
    %234 = math.tanh %233 : vector<8x32xf32>
    %235 = arith.mulf %230, %234 : vector<8x32xf32>
    %c16 = arith.constant 16 : index
    %c0_86 = arith.constant 0 : index
    %236 = vector.load %arg7[%c16, %c0_86] : memref<64x32xf32, #tpu.memory_space<vmem>>, vector<8x32xf32>
    tpu.vector_store %arg7[%c16, %c0_86], %235 {strides = array<i32>} : memref<64x32xf32, #tpu.memory_space<vmem>>, vector<8x32xf32>,
    %237 = vector.extract_strided_slice %9 {offsets = [24, 0], sizes = [8, 128], strides = [1, 1]} : vector<64x128xf32> to vector<8x128xf32>
    %238 = arith.truncf %199 : vector<8x32xf32> to vector<8x32xbf16>
    %cst_87 = arith.constant dense<0.000000e+00> : vector<8x128xf32>
    %239 = tpu.matmul %238, %10, %cst_87 {dimension_numbers = #tpu.dot_dimension_numbers<[1], [0], [0], [1], [0, 0, 1, 1], [], []>} : vector<8x32xbf16>, vector<32x128xbf16>, vector<8x128xf32> -> vector<8x128xf32>
    %240 = arith.addf %237, %239 : vector<8x128xf32>
    %241 = vector.extract_strided_slice %240 {offsets = [0, 0], sizes = [8, 32], strides = [1, 1]} : vector<8x128xf32> to vector<8x32xf32>
    %cst_88 = arith.constant 5.000000e-01 : f32
    %242 = vector.broadcast %cst_88 : f32 to vector<8x32xf32>
    %243 = arith.mulf %242, %241 : vector<8x32xf32>
    %244 = math.tanh %243 : vector<8x32xf32>
    %cst_89 = arith.constant 1.000000e+00 : f32
    %245 = vector.broadcast %cst_89 : f32 to vector<8x32xf32>
    %246 = arith.addf %244, %245 : vector<8x32xf32>
    %cst_90 = arith.constant 5.000000e-01 : f32
    %247 = vector.broadcast %cst_90 : f32 to vector<8x32xf32>
    %248 = arith.mulf %247, %246 : vector<8x32xf32>
    %249 = vector.extract_strided_slice %240 {offsets = [0, 32], sizes = [8, 32], strides = [1, 1]} : vector<8x128xf32> to vector<8x32xf32>
    %cst_91 = arith.constant 5.000000e-01 : f32
    %250 = vector.broadcast %cst_91 : f32 to vector<8x32xf32>
    %251 = arith.mulf %250, %249 : vector<8x32xf32>
    %252 = math.tanh %251 : vector<8x32xf32>
    %cst_92 = arith.constant 1.000000e+00 : f32
    %253 = vector.broadcast %cst_92 : f32 to vector<8x32xf32>
    %254 = arith.addf %252, %253 : vector<8x32xf32>
    %cst_93 = arith.constant 5.000000e-01 : f32
    %255 = vector.broadcast %cst_93 : f32 to vector<8x32xf32>
    %256 = arith.mulf %255, %254 : vector<8x32xf32>
    %257 = vector.extract_strided_slice %240 {offsets = [0, 64], sizes = [8, 32], strides = [1, 1]} : vector<8x128xf32> to vector<8x32xf32>
    %258 = math.tanh %257 : vector<8x32xf32>
    %259 = vector.extract_strided_slice %240 {offsets = [0, 96], sizes = [8, 32], strides = [1, 1]} : vector<8x128xf32> to vector<8x32xf32>
    %cst_94 = arith.constant 5.000000e-01 : f32
    %260 = vector.broadcast %cst_94 : f32 to vector<8x32xf32>
    %261 = arith.mulf %260, %259 : vector<8x32xf32>
    %262 = math.tanh %261 : vector<8x32xf32>
    %cst_95 = arith.constant 1.000000e+00 : f32
    %263 = vector.broadcast %cst_95 : f32 to vector<8x32xf32>
    %264 = arith.addf %262, %263 : vector<8x32xf32>
    %cst_96 = arith.constant 5.000000e-01 : f32
    %265 = vector.broadcast %cst_96 : f32 to vector<8x32xf32>
    %266 = arith.mulf %265, %264 : vector<8x32xf32>
    %267 = arith.mulf %256, %197 : vector<8x32xf32>
    %268 = arith.mulf %248, %258 : vector<8x32xf32>
    %269 = arith.addf %267, %268 : vector<8x32xf32>
    %270 = math.tanh %269 : vector<8x32xf32>
    %271 = arith.mulf %266, %270 : vector<8x32xf32>
    %272 = tpu.concatenate %271, %235 in 1 : vector<8x32xf32>, vector<8x32xf32> -> vector<8x64xf32>
    %273 = arith.truncf %272 : vector<8x64xf32> to vector<8x64xbf16>
    %cst_97 = arith.constant dense<0.000000e+00> : vector<8x128xf32>
    %274 = tpu.matmul %273, %11, %cst_97 {dimension_numbers = #tpu.dot_dimension_numbers<[1], [0], [0], [1], [0, 0, 1, 1], [], []>} : vector<8x64xbf16>, vector<64x128xbf16>, vector<8x128xf32> -> vector<8x128xf32>
    %275 = vector.broadcast %12 : vector<1x128xf32> to vector<8x128xf32>
    %276 = arith.addf %274, %275 : vector<8x128xf32>
    %277 = vector.extract_strided_slice %276 {offsets = [0, 0], sizes = [8, 32], strides = [1, 1]} : vector<8x128xf32> to vector<8x32xf32>
    %cst_98 = arith.constant 5.000000e-01 : f32
    %278 = vector.broadcast %cst_98 : f32 to vector<8x32xf32>
    %279 = arith.mulf %278, %277 : vector<8x32xf32>
    %280 = math.tanh %279 : vector<8x32xf32>
    %cst_99 = arith.constant 1.000000e+00 : f32
    %281 = vector.broadcast %cst_99 : f32 to vector<8x32xf32>
    %282 = arith.addf %280, %281 : vector<8x32xf32>
    %cst_100 = arith.constant 5.000000e-01 : f32
    %283 = vector.broadcast %cst_100 : f32 to vector<8x32xf32>
    %284 = arith.mulf %283, %282 : vector<8x32xf32>
    %285 = vector.extract_strided_slice %276 {offsets = [0, 32], sizes = [8, 32], strides = [1, 1]} : vector<8x128xf32> to vector<8x32xf32>
    %cst_101 = arith.constant 5.000000e-01 : f32
    %286 = vector.broadcast %cst_101 : f32 to vector<8x32xf32>
    %287 = arith.mulf %286, %285 : vector<8x32xf32>
    %288 = math.tanh %287 : vector<8x32xf32>
    %cst_102 = arith.constant 1.000000e+00 : f32
    %289 = vector.broadcast %cst_102 : f32 to vector<8x32xf32>
    %290 = arith.addf %288, %289 : vector<8x32xf32>
    %cst_103 = arith.constant 5.000000e-01 : f32
    %291 = vector.broadcast %cst_103 : f32 to vector<8x32xf32>
    %292 = arith.mulf %291, %290 : vector<8x32xf32>
    %293 = vector.extract_strided_slice %276 {offsets = [0, 64], sizes = [8, 32], strides = [1, 1]} : vector<8x128xf32> to vector<8x32xf32>
    %294 = math.tanh %293 : vector<8x32xf32>
    %295 = vector.extract_strided_slice %276 {offsets = [0, 96], sizes = [8, 32], strides = [1, 1]} : vector<8x128xf32> to vector<8x32xf32>
    %cst_104 = arith.constant 5.000000e-01 : f32
    %296 = vector.broadcast %cst_104 : f32 to vector<8x32xf32>
    %297 = arith.mulf %296, %295 : vector<8x32xf32>
    %298 = math.tanh %297 : vector<8x32xf32>
    %cst_105 = arith.constant 1.000000e+00 : f32
    %299 = vector.broadcast %cst_105 : f32 to vector<8x32xf32>
    %300 = arith.addf %298, %299 : vector<8x32xf32>
    %cst_106 = arith.constant 5.000000e-01 : f32
    %301 = vector.broadcast %cst_106 : f32 to vector<8x32xf32>
    %302 = arith.mulf %301, %300 : vector<8x32xf32>
    %303 = arith.mulf %292, %233 : vector<8x32xf32>
    %304 = arith.mulf %284, %294 : vector<8x32xf32>
    %305 = arith.addf %303, %304 : vector<8x32xf32>
    %306 = math.tanh %305 : vector<8x32xf32>
    %307 = arith.mulf %302, %306 : vector<8x32xf32>
    %c24 = arith.constant 24 : index
    %c0_107 = arith.constant 0 : index
    %308 = vector.load %arg7[%c24, %c0_107] : memref<64x32xf32, #tpu.memory_space<vmem>>, vector<8x32xf32>
    tpu.vector_store %arg7[%c24, %c0_107], %307 {strides = array<i32>} : memref<64x32xf32, #tpu.memory_space<vmem>>, vector<8x32xf32>,
    %309 = vector.extract_strided_slice %9 {offsets = [32, 0], sizes = [8, 128], strides = [1, 1]} : vector<64x128xf32> to vector<8x128xf32>
    %310 = arith.truncf %271 : vector<8x32xf32> to vector<8x32xbf16>
    %cst_108 = arith.constant dense<0.000000e+00> : vector<8x128xf32>
    %311 = tpu.matmul %310, %10, %cst_108 {dimension_numbers = #tpu.dot_dimension_numbers<[1], [0], [0], [1], [0, 0, 1, 1], [], []>} : vector<8x32xbf16>, vector<32x128xbf16>, vector<8x128xf32> -> vector<8x128xf32>
    %312 = arith.addf %309, %311 : vector<8x128xf32>
    %313 = vector.extract_strided_slice %312 {offsets = [0, 0], sizes = [8, 32], strides = [1, 1]} : vector<8x128xf32> to vector<8x32xf32>
    %cst_109 = arith.constant 5.000000e-01 : f32
    %314 = vector.broadcast %cst_109 : f32 to vector<8x32xf32>
    %315 = arith.mulf %314, %313 : vector<8x32xf32>
    %316 = math.tanh %315 : vector<8x32xf32>
    %cst_110 = arith.constant 1.000000e+00 : f32
    %317 = vector.broadcast %cst_110 : f32 to vector<8x32xf32>
    %318 = arith.addf %316, %317 : vector<8x32xf32>
    %cst_111 = arith.constant 5.000000e-01 : f32
    %319 = vector.broadcast %cst_111 : f32 to vector<8x32xf32>
    %320 = arith.mulf %319, %318 : vector<8x32xf32>
    %321 = vector.extract_strided_slice %312 {offsets = [0, 32], sizes = [8, 32], strides = [1, 1]} : vector<8x128xf32> to vector<8x32xf32>
    %cst_112 = arith.constant 5.000000e-01 : f32
    %322 = vector.broadcast %cst_112 : f32 to vector<8x32xf32>
    %323 = arith.mulf %322, %321 : vector<8x32xf32>
    %324 = math.tanh %323 : vector<8x32xf32>
    %cst_113 = arith.constant 1.000000e+00 : f32
    %325 = vector.broadcast %cst_113 : f32 to vector<8x32xf32>
    %326 = arith.addf %324, %325 : vector<8x32xf32>
    %cst_114 = arith.constant 5.000000e-01 : f32
    %327 = vector.broadcast %cst_114 : f32 to vector<8x32xf32>
    %328 = arith.mulf %327, %326 : vector<8x32xf32>
    %329 = vector.extract_strided_slice %312 {offsets = [0, 64], sizes = [8, 32], strides = [1, 1]} : vector<8x128xf32> to vector<8x32xf32>
    %330 = math.tanh %329 : vector<8x32xf32>
    %331 = vector.extract_strided_slice %312 {offsets = [0, 96], sizes = [8, 32], strides = [1, 1]} : vector<8x128xf32> to vector<8x32xf32>
    %cst_115 = arith.constant 5.000000e-01 : f32
    %332 = vector.broadcast %cst_115 : f32 to vector<8x32xf32>
    %333 = arith.mulf %332, %331 : vector<8x32xf32>
    %334 = math.tanh %333 : vector<8x32xf32>
    %cst_116 = arith.constant 1.000000e+00 : f32
    %335 = vector.broadcast %cst_116 : f32 to vector<8x32xf32>
    %336 = arith.addf %334, %335 : vector<8x32xf32>
    %cst_117 = arith.constant 5.000000e-01 : f32
    %337 = vector.broadcast %cst_117 : f32 to vector<8x32xf32>
    %338 = arith.mulf %337, %336 : vector<8x32xf32>
    %339 = arith.mulf %328, %269 : vector<8x32xf32>
    %340 = arith.mulf %320, %330 : vector<8x32xf32>
    %341 = arith.addf %339, %340 : vector<8x32xf32>
    %342 = math.tanh %341 : vector<8x32xf32>
    %343 = arith.mulf %338, %342 : vector<8x32xf32>
    %344 = tpu.concatenate %343, %307 in 1 : vector<8x32xf32>, vector<8x32xf32> -> vector<8x64xf32>
    %345 = arith.truncf %344 : vector<8x64xf32> to vector<8x64xbf16>
    %cst_118 = arith.constant dense<0.000000e+00> : vector<8x128xf32>
    %346 = tpu.matmul %345, %11, %cst_118 {dimension_numbers = #tpu.dot_dimension_numbers<[1], [0], [0], [1], [0, 0, 1, 1], [], []>} : vector<8x64xbf16>, vector<64x128xbf16>, vector<8x128xf32> -> vector<8x128xf32>
    %347 = vector.broadcast %12 : vector<1x128xf32> to vector<8x128xf32>
    %348 = arith.addf %346, %347 : vector<8x128xf32>
    %349 = vector.extract_strided_slice %348 {offsets = [0, 0], sizes = [8, 32], strides = [1, 1]} : vector<8x128xf32> to vector<8x32xf32>
    %cst_119 = arith.constant 5.000000e-01 : f32
    %350 = vector.broadcast %cst_119 : f32 to vector<8x32xf32>
    %351 = arith.mulf %350, %349 : vector<8x32xf32>
    %352 = math.tanh %351 : vector<8x32xf32>
    %cst_120 = arith.constant 1.000000e+00 : f32
    %353 = vector.broadcast %cst_120 : f32 to vector<8x32xf32>
    %354 = arith.addf %352, %353 : vector<8x32xf32>
    %cst_121 = arith.constant 5.000000e-01 : f32
    %355 = vector.broadcast %cst_121 : f32 to vector<8x32xf32>
    %356 = arith.mulf %355, %354 : vector<8x32xf32>
    %357 = vector.extract_strided_slice %348 {offsets = [0, 32], sizes = [8, 32], strides = [1, 1]} : vector<8x128xf32> to vector<8x32xf32>
    %cst_122 = arith.constant 5.000000e-01 : f32
    %358 = vector.broadcast %cst_122 : f32 to vector<8x32xf32>
    %359 = arith.mulf %358, %357 : vector<8x32xf32>
    %360 = math.tanh %359 : vector<8x32xf32>
    %cst_123 = arith.constant 1.000000e+00 : f32
    %361 = vector.broadcast %cst_123 : f32 to vector<8x32xf32>
    %362 = arith.addf %360, %361 : vector<8x32xf32>
    %cst_124 = arith.constant 5.000000e-01 : f32
    %363 = vector.broadcast %cst_124 : f32 to vector<8x32xf32>
    %364 = arith.mulf %363, %362 : vector<8x32xf32>
    %365 = vector.extract_strided_slice %348 {offsets = [0, 64], sizes = [8, 32], strides = [1, 1]} : vector<8x128xf32> to vector<8x32xf32>
    %366 = math.tanh %365 : vector<8x32xf32>
    %367 = vector.extract_strided_slice %348 {offsets = [0, 96], sizes = [8, 32], strides = [1, 1]} : vector<8x128xf32> to vector<8x32xf32>
    %cst_125 = arith.constant 5.000000e-01 : f32
    %368 = vector.broadcast %cst_125 : f32 to vector<8x32xf32>
    %369 = arith.mulf %368, %367 : vector<8x32xf32>
    %370 = math.tanh %369 : vector<8x32xf32>
    %cst_126 = arith.constant 1.000000e+00 : f32
    %371 = vector.broadcast %cst_126 : f32 to vector<8x32xf32>
    %372 = arith.addf %370, %371 : vector<8x32xf32>
    %cst_127 = arith.constant 5.000000e-01 : f32
    %373 = vector.broadcast %cst_127 : f32 to vector<8x32xf32>
    %374 = arith.mulf %373, %372 : vector<8x32xf32>
    %375 = arith.mulf %364, %305 : vector<8x32xf32>
    %376 = arith.mulf %356, %366 : vector<8x32xf32>
    %377 = arith.addf %375, %376 : vector<8x32xf32>
    %378 = math.tanh %377 : vector<8x32xf32>
    %379 = arith.mulf %374, %378 : vector<8x32xf32>
    %c32 = arith.constant 32 : index
    %c0_128 = arith.constant 0 : index
    %380 = vector.load %arg7[%c32, %c0_128] : memref<64x32xf32, #tpu.memory_space<vmem>>, vector<8x32xf32>
    tpu.vector_store %arg7[%c32, %c0_128], %379 {strides = array<i32>} : memref<64x32xf32, #tpu.memory_space<vmem>>, vector<8x32xf32>,
    %381 = vector.extract_strided_slice %9 {offsets = [40, 0], sizes = [8, 128], strides = [1, 1]} : vector<64x128xf32> to vector<8x128xf32>
    %382 = arith.truncf %343 : vector<8x32xf32> to vector<8x32xbf16>
    %cst_129 = arith.constant dense<0.000000e+00> : vector<8x128xf32>
    %383 = tpu.matmul %382, %10, %cst_129 {dimension_numbers = #tpu.dot_dimension_numbers<[1], [0], [0], [1], [0, 0, 1, 1], [], []>} : vector<8x32xbf16>, vector<32x128xbf16>, vector<8x128xf32> -> vector<8x128xf32>
    %384 = arith.addf %381, %383 : vector<8x128xf32>
    %385 = vector.extract_strided_slice %384 {offsets = [0, 0], sizes = [8, 32], strides = [1, 1]} : vector<8x128xf32> to vector<8x32xf32>
    %cst_130 = arith.constant 5.000000e-01 : f32
    %386 = vector.broadcast %cst_130 : f32 to vector<8x32xf32>
    %387 = arith.mulf %386, %385 : vector<8x32xf32>
    %388 = math.tanh %387 : vector<8x32xf32>
    %cst_131 = arith.constant 1.000000e+00 : f32
    %389 = vector.broadcast %cst_131 : f32 to vector<8x32xf32>
    %390 = arith.addf %388, %389 : vector<8x32xf32>
    %cst_132 = arith.constant 5.000000e-01 : f32
    %391 = vector.broadcast %cst_132 : f32 to vector<8x32xf32>
    %392 = arith.mulf %391, %390 : vector<8x32xf32>
    %393 = vector.extract_strided_slice %384 {offsets = [0, 32], sizes = [8, 32], strides = [1, 1]} : vector<8x128xf32> to vector<8x32xf32>
    %cst_133 = arith.constant 5.000000e-01 : f32
    %394 = vector.broadcast %cst_133 : f32 to vector<8x32xf32>
    %395 = arith.mulf %394, %393 : vector<8x32xf32>
    %396 = math.tanh %395 : vector<8x32xf32>
    %cst_134 = arith.constant 1.000000e+00 : f32
    %397 = vector.broadcast %cst_134 : f32 to vector<8x32xf32>
    %398 = arith.addf %396, %397 : vector<8x32xf32>
    %cst_135 = arith.constant 5.000000e-01 : f32
    %399 = vector.broadcast %cst_135 : f32 to vector<8x32xf32>
    %400 = arith.mulf %399, %398 : vector<8x32xf32>
    %401 = vector.extract_strided_slice %384 {offsets = [0, 64], sizes = [8, 32], strides = [1, 1]} : vector<8x128xf32> to vector<8x32xf32>
    %402 = math.tanh %401 : vector<8x32xf32>
    %403 = vector.extract_strided_slice %384 {offsets = [0, 96], sizes = [8, 32], strides = [1, 1]} : vector<8x128xf32> to vector<8x32xf32>
    %cst_136 = arith.constant 5.000000e-01 : f32
    %404 = vector.broadcast %cst_136 : f32 to vector<8x32xf32>
    %405 = arith.mulf %404, %403 : vector<8x32xf32>
    %406 = math.tanh %405 : vector<8x32xf32>
    %cst_137 = arith.constant 1.000000e+00 : f32
    %407 = vector.broadcast %cst_137 : f32 to vector<8x32xf32>
    %408 = arith.addf %406, %407 : vector<8x32xf32>
    %cst_138 = arith.constant 5.000000e-01 : f32
    %409 = vector.broadcast %cst_138 : f32 to vector<8x32xf32>
    %410 = arith.mulf %409, %408 : vector<8x32xf32>
    %411 = arith.mulf %400, %341 : vector<8x32xf32>
    %412 = arith.mulf %392, %402 : vector<8x32xf32>
    %413 = arith.addf %411, %412 : vector<8x32xf32>
    %414 = math.tanh %413 : vector<8x32xf32>
    %415 = arith.mulf %410, %414 : vector<8x32xf32>
    %416 = tpu.concatenate %415, %379 in 1 : vector<8x32xf32>, vector<8x32xf32> -> vector<8x64xf32>
    %417 = arith.truncf %416 : vector<8x64xf32> to vector<8x64xbf16>
    %cst_139 = arith.constant dense<0.000000e+00> : vector<8x128xf32>
    %418 = tpu.matmul %417, %11, %cst_139 {dimension_numbers = #tpu.dot_dimension_numbers<[1], [0], [0], [1], [0, 0, 1, 1], [], []>} : vector<8x64xbf16>, vector<64x128xbf16>, vector<8x128xf32> -> vector<8x128xf32>
    %419 = vector.broadcast %12 : vector<1x128xf32> to vector<8x128xf32>
    %420 = arith.addf %418, %419 : vector<8x128xf32>
    %421 = vector.extract_strided_slice %420 {offsets = [0, 0], sizes = [8, 32], strides = [1, 1]} : vector<8x128xf32> to vector<8x32xf32>
    %cst_140 = arith.constant 5.000000e-01 : f32
    %422 = vector.broadcast %cst_140 : f32 to vector<8x32xf32>
    %423 = arith.mulf %422, %421 : vector<8x32xf32>
    %424 = math.tanh %423 : vector<8x32xf32>
    %cst_141 = arith.constant 1.000000e+00 : f32
    %425 = vector.broadcast %cst_141 : f32 to vector<8x32xf32>
    %426 = arith.addf %424, %425 : vector<8x32xf32>
    %cst_142 = arith.constant 5.000000e-01 : f32
    %427 = vector.broadcast %cst_142 : f32 to vector<8x32xf32>
    %428 = arith.mulf %427, %426 : vector<8x32xf32>
    %429 = vector.extract_strided_slice %420 {offsets = [0, 32], sizes = [8, 32], strides = [1, 1]} : vector<8x128xf32> to vector<8x32xf32>
    %cst_143 = arith.constant 5.000000e-01 : f32
    %430 = vector.broadcast %cst_143 : f32 to vector<8x32xf32>
    %431 = arith.mulf %430, %429 : vector<8x32xf32>
    %432 = math.tanh %431 : vector<8x32xf32>
    %cst_144 = arith.constant 1.000000e+00 : f32
    %433 = vector.broadcast %cst_144 : f32 to vector<8x32xf32>
    %434 = arith.addf %432, %433 : vector<8x32xf32>
    %cst_145 = arith.constant 5.000000e-01 : f32
    %435 = vector.broadcast %cst_145 : f32 to vector<8x32xf32>
    %436 = arith.mulf %435, %434 : vector<8x32xf32>
    %437 = vector.extract_strided_slice %420 {offsets = [0, 64], sizes = [8, 32], strides = [1, 1]} : vector<8x128xf32> to vector<8x32xf32>
    %438 = math.tanh %437 : vector<8x32xf32>
    %439 = vector.extract_strided_slice %420 {offsets = [0, 96], sizes = [8, 32], strides = [1, 1]} : vector<8x128xf32> to vector<8x32xf32>
    %cst_146 = arith.constant 5.000000e-01 : f32
    %440 = vector.broadcast %cst_146 : f32 to vector<8x32xf32>
    %441 = arith.mulf %440, %439 : vector<8x32xf32>
    %442 = math.tanh %441 : vector<8x32xf32>
    %cst_147 = arith.constant 1.000000e+00 : f32
    %443 = vector.broadcast %cst_147 : f32 to vector<8x32xf32>
    %444 = arith.addf %442, %443 : vector<8x32xf32>
    %cst_148 = arith.constant 5.000000e-01 : f32
    %445 = vector.broadcast %cst_148 : f32 to vector<8x32xf32>
    %446 = arith.mulf %445, %444 : vector<8x32xf32>
    %447 = arith.mulf %436, %377 : vector<8x32xf32>
    %448 = arith.mulf %428, %438 : vector<8x32xf32>
    %449 = arith.addf %447, %448 : vector<8x32xf32>
    %450 = math.tanh %449 : vector<8x32xf32>
    %451 = arith.mulf %446, %450 : vector<8x32xf32>
    %c40 = arith.constant 40 : index
    %c0_149 = arith.constant 0 : index
    %452 = vector.load %arg7[%c40, %c0_149] : memref<64x32xf32, #tpu.memory_space<vmem>>, vector<8x32xf32>
    tpu.vector_store %arg7[%c40, %c0_149], %451 {strides = array<i32>} : memref<64x32xf32, #tpu.memory_space<vmem>>, vector<8x32xf32>,
    %453 = vector.extract_strided_slice %9 {offsets = [48, 0], sizes = [8, 128], strides = [1, 1]} : vector<64x128xf32> to vector<8x128xf32>
    %454 = arith.truncf %415 : vector<8x32xf32> to vector<8x32xbf16>
    %cst_150 = arith.constant dense<0.000000e+00> : vector<8x128xf32>
    %455 = tpu.matmul %454, %10, %cst_150 {dimension_numbers = #tpu.dot_dimension_numbers<[1], [0], [0], [1], [0, 0, 1, 1], [], []>} : vector<8x32xbf16>, vector<32x128xbf16>, vector<8x128xf32> -> vector<8x128xf32>
    %456 = arith.addf %453, %455 : vector<8x128xf32>
    %457 = vector.extract_strided_slice %456 {offsets = [0, 0], sizes = [8, 32], strides = [1, 1]} : vector<8x128xf32> to vector<8x32xf32>
    %cst_151 = arith.constant 5.000000e-01 : f32
    %458 = vector.broadcast %cst_151 : f32 to vector<8x32xf32>
    %459 = arith.mulf %458, %457 : vector<8x32xf32>
    %460 = math.tanh %459 : vector<8x32xf32>
    %cst_152 = arith.constant 1.000000e+00 : f32
    %461 = vector.broadcast %cst_152 : f32 to vector<8x32xf32>
    %462 = arith.addf %460, %461 : vector<8x32xf32>
    %cst_153 = arith.constant 5.000000e-01 : f32
    %463 = vector.broadcast %cst_153 : f32 to vector<8x32xf32>
    %464 = arith.mulf %463, %462 : vector<8x32xf32>
    %465 = vector.extract_strided_slice %456 {offsets = [0, 32], sizes = [8, 32], strides = [1, 1]} : vector<8x128xf32> to vector<8x32xf32>
    %cst_154 = arith.constant 5.000000e-01 : f32
    %466 = vector.broadcast %cst_154 : f32 to vector<8x32xf32>
    %467 = arith.mulf %466, %465 : vector<8x32xf32>
    %468 = math.tanh %467 : vector<8x32xf32>
    %cst_155 = arith.constant 1.000000e+00 : f32
    %469 = vector.broadcast %cst_155 : f32 to vector<8x32xf32>
    %470 = arith.addf %468, %469 : vector<8x32xf32>
    %cst_156 = arith.constant 5.000000e-01 : f32
    %471 = vector.broadcast %cst_156 : f32 to vector<8x32xf32>
    %472 = arith.mulf %471, %470 : vector<8x32xf32>
    %473 = vector.extract_strided_slice %456 {offsets = [0, 64], sizes = [8, 32], strides = [1, 1]} : vector<8x128xf32> to vector<8x32xf32>
    %474 = math.tanh %473 : vector<8x32xf32>
    %475 = vector.extract_strided_slice %456 {offsets = [0, 96], sizes = [8, 32], strides = [1, 1]} : vector<8x128xf32> to vector<8x32xf32>
    %cst_157 = arith.constant 5.000000e-01 : f32
    %476 = vector.broadcast %cst_157 : f32 to vector<8x32xf32>
    %477 = arith.mulf %476, %475 : vector<8x32xf32>
    %478 = math.tanh %477 : vector<8x32xf32>
    %cst_158 = arith.constant 1.000000e+00 : f32
    %479 = vector.broadcast %cst_158 : f32 to vector<8x32xf32>
    %480 = arith.addf %478, %479 : vector<8x32xf32>
    %cst_159 = arith.constant 5.000000e-01 : f32
    %481 = vector.broadcast %cst_159 : f32 to vector<8x32xf32>
    %482 = arith.mulf %481, %480 : vector<8x32xf32>
    %483 = arith.mulf %472, %413 : vector<8x32xf32>
    %484 = arith.mulf %464, %474 : vector<8x32xf32>
    %485 = arith.addf %483, %484 : vector<8x32xf32>
    %486 = math.tanh %485 : vector<8x32xf32>
    %487 = arith.mulf %482, %486 : vector<8x32xf32>
    %488 = tpu.concatenate %487, %451 in 1 : vector<8x32xf32>, vector<8x32xf32> -> vector<8x64xf32>
    %489 = arith.truncf %488 : vector<8x64xf32> to vector<8x64xbf16>
    %cst_160 = arith.constant dense<0.000000e+00> : vector<8x128xf32>
    %490 = tpu.matmul %489, %11, %cst_160 {dimension_numbers = #tpu.dot_dimension_numbers<[1], [0], [0], [1], [0, 0, 1, 1], [], []>} : vector<8x64xbf16>, vector<64x128xbf16>, vector<8x128xf32> -> vector<8x128xf32>
    %491 = vector.broadcast %12 : vector<1x128xf32> to vector<8x128xf32>
    %492 = arith.addf %490, %491 : vector<8x128xf32>
    %493 = vector.extract_strided_slice %492 {offsets = [0, 0], sizes = [8, 32], strides = [1, 1]} : vector<8x128xf32> to vector<8x32xf32>
    %cst_161 = arith.constant 5.000000e-01 : f32
    %494 = vector.broadcast %cst_161 : f32 to vector<8x32xf32>
    %495 = arith.mulf %494, %493 : vector<8x32xf32>
    %496 = math.tanh %495 : vector<8x32xf32>
    %cst_162 = arith.constant 1.000000e+00 : f32
    %497 = vector.broadcast %cst_162 : f32 to vector<8x32xf32>
    %498 = arith.addf %496, %497 : vector<8x32xf32>
    %cst_163 = arith.constant 5.000000e-01 : f32
    %499 = vector.broadcast %cst_163 : f32 to vector<8x32xf32>
    %500 = arith.mulf %499, %498 : vector<8x32xf32>
    %501 = vector.extract_strided_slice %492 {offsets = [0, 32], sizes = [8, 32], strides = [1, 1]} : vector<8x128xf32> to vector<8x32xf32>
    %cst_164 = arith.constant 5.000000e-01 : f32
    %502 = vector.broadcast %cst_164 : f32 to vector<8x32xf32>
    %503 = arith.mulf %502, %501 : vector<8x32xf32>
    %504 = math.tanh %503 : vector<8x32xf32>
    %cst_165 = arith.constant 1.000000e+00 : f32
    %505 = vector.broadcast %cst_165 : f32 to vector<8x32xf32>
    %506 = arith.addf %504, %505 : vector<8x32xf32>
    %cst_166 = arith.constant 5.000000e-01 : f32
    %507 = vector.broadcast %cst_166 : f32 to vector<8x32xf32>
    %508 = arith.mulf %507, %506 : vector<8x32xf32>
    %509 = vector.extract_strided_slice %492 {offsets = [0, 64], sizes = [8, 32], strides = [1, 1]} : vector<8x128xf32> to vector<8x32xf32>
    %510 = math.tanh %509 : vector<8x32xf32>
    %511 = vector.extract_strided_slice %492 {offsets = [0, 96], sizes = [8, 32], strides = [1, 1]} : vector<8x128xf32> to vector<8x32xf32>
    %cst_167 = arith.constant 5.000000e-01 : f32
    %512 = vector.broadcast %cst_167 : f32 to vector<8x32xf32>
    %513 = arith.mulf %512, %511 : vector<8x32xf32>
    %514 = math.tanh %513 : vector<8x32xf32>
    %cst_168 = arith.constant 1.000000e+00 : f32
    %515 = vector.broadcast %cst_168 : f32 to vector<8x32xf32>
    %516 = arith.addf %514, %515 : vector<8x32xf32>
    %cst_169 = arith.constant 5.000000e-01 : f32
    %517 = vector.broadcast %cst_169 : f32 to vector<8x32xf32>
    %518 = arith.mulf %517, %516 : vector<8x32xf32>
    %519 = arith.mulf %508, %449 : vector<8x32xf32>
    %520 = arith.mulf %500, %510 : vector<8x32xf32>
    %521 = arith.addf %519, %520 : vector<8x32xf32>
    %522 = math.tanh %521 : vector<8x32xf32>
    %523 = arith.mulf %518, %522 : vector<8x32xf32>
    %c48 = arith.constant 48 : index
    %c0_170 = arith.constant 0 : index
    %524 = vector.load %arg7[%c48, %c0_170] : memref<64x32xf32, #tpu.memory_space<vmem>>, vector<8x32xf32>
    tpu.vector_store %arg7[%c48, %c0_170], %523 {strides = array<i32>} : memref<64x32xf32, #tpu.memory_space<vmem>>, vector<8x32xf32>,
    %525 = vector.extract_strided_slice %9 {offsets = [56, 0], sizes = [8, 128], strides = [1, 1]} : vector<64x128xf32> to vector<8x128xf32>
    %526 = arith.truncf %487 : vector<8x32xf32> to vector<8x32xbf16>
    %cst_171 = arith.constant dense<0.000000e+00> : vector<8x128xf32>
    %527 = tpu.matmul %526, %10, %cst_171 {dimension_numbers = #tpu.dot_dimension_numbers<[1], [0], [0], [1], [0, 0, 1, 1], [], []>} : vector<8x32xbf16>, vector<32x128xbf16>, vector<8x128xf32> -> vector<8x128xf32>
    %528 = arith.addf %525, %527 : vector<8x128xf32>
    %529 = vector.extract_strided_slice %528 {offsets = [0, 0], sizes = [8, 32], strides = [1, 1]} : vector<8x128xf32> to vector<8x32xf32>
    %cst_172 = arith.constant 5.000000e-01 : f32
    %530 = vector.broadcast %cst_172 : f32 to vector<8x32xf32>
    %531 = arith.mulf %530, %529 : vector<8x32xf32>
    %532 = math.tanh %531 : vector<8x32xf32>
    %cst_173 = arith.constant 1.000000e+00 : f32
    %533 = vector.broadcast %cst_173 : f32 to vector<8x32xf32>
    %534 = arith.addf %532, %533 : vector<8x32xf32>
    %cst_174 = arith.constant 5.000000e-01 : f32
    %535 = vector.broadcast %cst_174 : f32 to vector<8x32xf32>
    %536 = arith.mulf %535, %534 : vector<8x32xf32>
    %537 = vector.extract_strided_slice %528 {offsets = [0, 32], sizes = [8, 32], strides = [1, 1]} : vector<8x128xf32> to vector<8x32xf32>
    %cst_175 = arith.constant 5.000000e-01 : f32
    %538 = vector.broadcast %cst_175 : f32 to vector<8x32xf32>
    %539 = arith.mulf %538, %537 : vector<8x32xf32>
    %540 = math.tanh %539 : vector<8x32xf32>
    %cst_176 = arith.constant 1.000000e+00 : f32
    %541 = vector.broadcast %cst_176 : f32 to vector<8x32xf32>
    %542 = arith.addf %540, %541 : vector<8x32xf32>
    %cst_177 = arith.constant 5.000000e-01 : f32
    %543 = vector.broadcast %cst_177 : f32 to vector<8x32xf32>
    %544 = arith.mulf %543, %542 : vector<8x32xf32>
    %545 = vector.extract_strided_slice %528 {offsets = [0, 64], sizes = [8, 32], strides = [1, 1]} : vector<8x128xf32> to vector<8x32xf32>
    %546 = math.tanh %545 : vector<8x32xf32>
    %547 = vector.extract_strided_slice %528 {offsets = [0, 96], sizes = [8, 32], strides = [1, 1]} : vector<8x128xf32> to vector<8x32xf32>
    %cst_178 = arith.constant 5.000000e-01 : f32
    %548 = vector.broadcast %cst_178 : f32 to vector<8x32xf32>
    %549 = arith.mulf %548, %547 : vector<8x32xf32>
    %550 = math.tanh %549 : vector<8x32xf32>
    %cst_179 = arith.constant 1.000000e+00 : f32
    %551 = vector.broadcast %cst_179 : f32 to vector<8x32xf32>
    %552 = arith.addf %550, %551 : vector<8x32xf32>
    %cst_180 = arith.constant 5.000000e-01 : f32
    %553 = vector.broadcast %cst_180 : f32 to vector<8x32xf32>
    %554 = arith.mulf %553, %552 : vector<8x32xf32>
    %555 = arith.mulf %544, %485 : vector<8x32xf32>
    %556 = arith.mulf %536, %546 : vector<8x32xf32>
    %557 = arith.addf %555, %556 : vector<8x32xf32>
    %558 = math.tanh %557 : vector<8x32xf32>
    %559 = arith.mulf %554, %558 : vector<8x32xf32>
    %560 = tpu.concatenate %559, %523 in 1 : vector<8x32xf32>, vector<8x32xf32> -> vector<8x64xf32>
    %561 = arith.truncf %560 : vector<8x64xf32> to vector<8x64xbf16>
    %cst_181 = arith.constant dense<0.000000e+00> : vector<8x128xf32>
    %562 = tpu.matmul %561, %11, %cst_181 {dimension_numbers = #tpu.dot_dimension_numbers<[1], [0], [0], [1], [0, 0, 1, 1], [], []>} : vector<8x64xbf16>, vector<64x128xbf16>, vector<8x128xf32> -> vector<8x128xf32>
    %563 = vector.broadcast %12 : vector<1x128xf32> to vector<8x128xf32>
    %564 = arith.addf %562, %563 : vector<8x128xf32>
    %565 = vector.extract_strided_slice %564 {offsets = [0, 0], sizes = [8, 32], strides = [1, 1]} : vector<8x128xf32> to vector<8x32xf32>
    %cst_182 = arith.constant 5.000000e-01 : f32
    %566 = vector.broadcast %cst_182 : f32 to vector<8x32xf32>
    %567 = arith.mulf %566, %565 : vector<8x32xf32>
    %568 = math.tanh %567 : vector<8x32xf32>
    %cst_183 = arith.constant 1.000000e+00 : f32
    %569 = vector.broadcast %cst_183 : f32 to vector<8x32xf32>
    %570 = arith.addf %568, %569 : vector<8x32xf32>
    %cst_184 = arith.constant 5.000000e-01 : f32
    %571 = vector.broadcast %cst_184 : f32 to vector<8x32xf32>
    %572 = arith.mulf %571, %570 : vector<8x32xf32>
    %573 = vector.extract_strided_slice %564 {offsets = [0, 32], sizes = [8, 32], strides = [1, 1]} : vector<8x128xf32> to vector<8x32xf32>
    %cst_185 = arith.constant 5.000000e-01 : f32
    %574 = vector.broadcast %cst_185 : f32 to vector<8x32xf32>
    %575 = arith.mulf %574, %573 : vector<8x32xf32>
    %576 = math.tanh %575 : vector<8x32xf32>
    %cst_186 = arith.constant 1.000000e+00 : f32
    %577 = vector.broadcast %cst_186 : f32 to vector<8x32xf32>
    %578 = arith.addf %576, %577 : vector<8x32xf32>
    %cst_187 = arith.constant 5.000000e-01 : f32
    %579 = vector.broadcast %cst_187 : f32 to vector<8x32xf32>
    %580 = arith.mulf %579, %578 : vector<8x32xf32>
    %581 = vector.extract_strided_slice %564 {offsets = [0, 64], sizes = [8, 32], strides = [1, 1]} : vector<8x128xf32> to vector<8x32xf32>
    %582 = math.tanh %581 : vector<8x32xf32>
    %583 = vector.extract_strided_slice %564 {offsets = [0, 96], sizes = [8, 32], strides = [1, 1]} : vector<8x128xf32> to vector<8x32xf32>
    %cst_188 = arith.constant 5.000000e-01 : f32
    %584 = vector.broadcast %cst_188 : f32 to vector<8x32xf32>
    %585 = arith.mulf %584, %583 : vector<8x32xf32>
    %586 = math.tanh %585 : vector<8x32xf32>
    %cst_189 = arith.constant 1.000000e+00 : f32
    %587 = vector.broadcast %cst_189 : f32 to vector<8x32xf32>
    %588 = arith.addf %586, %587 : vector<8x32xf32>
    %cst_190 = arith.constant 5.000000e-01 : f32
    %589 = vector.broadcast %cst_190 : f32 to vector<8x32xf32>
    %590 = arith.mulf %589, %588 : vector<8x32xf32>
    %591 = arith.mulf %580, %521 : vector<8x32xf32>
    %592 = arith.mulf %572, %582 : vector<8x32xf32>
    %593 = arith.addf %591, %592 : vector<8x32xf32>
    %594 = math.tanh %593 : vector<8x32xf32>
    %595 = arith.mulf %590, %594 : vector<8x32xf32>
    %c56 = arith.constant 56 : index
    %c0_191 = arith.constant 0 : index
    %596 = vector.load %arg7[%c56, %c0_191] : memref<64x32xf32, #tpu.memory_space<vmem>>, vector<8x32xf32>
    tpu.vector_store %arg7[%c56, %c0_191], %595 {strides = array<i32>} : memref<64x32xf32, #tpu.memory_space<vmem>>, vector<8x32xf32>,
    %c0_192 = arith.constant 0 : index
    %c0_193 = arith.constant 0 : index
    %c0_194 = arith.constant 0 : index
    %597 = vector.load %arg8[%c0_192, %c0_193, %c0_194] : memref<2x8x32xf32, #tpu.memory_space<vmem>>, vector<1x8x32xf32>
    %598 = vector.shape_cast %597 : vector<1x8x32xf32> to vector<8x32xf32>
    %599 = vector.shape_cast %559 : vector<8x32xf32> to vector<1x8x32xf32>
    tpu.vector_store %arg8[%c0_192, %c0_193, %c0_194], %599 {strides = array<i32>} : memref<2x8x32xf32, #tpu.memory_space<vmem>>, vector<1x8x32xf32>,
    %c0_195 = arith.constant 0 : index
    %c0_196 = arith.constant 0 : index
    %c0_197 = arith.constant 0 : index
    %600 = vector.load %arg9[%c0_195, %c0_196, %c0_197] : memref<2x8x32xf32, #tpu.memory_space<vmem>>, vector<1x8x32xf32>
    %601 = vector.shape_cast %600 : vector<1x8x32xf32> to vector<8x32xf32>
    %602 = vector.shape_cast %557 : vector<8x32xf32> to vector<1x8x32xf32>
    tpu.vector_store %arg9[%c0_195, %c0_196, %c0_197], %602 {strides = array<i32>} : memref<2x8x32xf32, #tpu.memory_space<vmem>>, vector<1x8x32xf32>,
    %c1_198 = arith.constant 1 : index
    %c0_199 = arith.constant 0 : index
    %c0_200 = arith.constant 0 : index
    %603 = vector.load %arg8[%c1_198, %c0_199, %c0_200] : memref<2x8x32xf32, #tpu.memory_space<vmem>>, vector<1x8x32xf32>
    %604 = vector.shape_cast %603 : vector<1x8x32xf32> to vector<8x32xf32>
    %605 = vector.shape_cast %595 : vector<8x32xf32> to vector<1x8x32xf32>
    tpu.vector_store %arg8[%c1_198, %c0_199, %c0_200], %605 {strides = array<i32>} : memref<2x8x32xf32, #tpu.memory_space<vmem>>, vector<1x8x32xf32>,
    %c1_201 = arith.constant 1 : index
    %c0_202 = arith.constant 0 : index
    %c0_203 = arith.constant 0 : index
    %606 = vector.load %arg9[%c1_201, %c0_202, %c0_203] : memref<2x8x32xf32, #tpu.memory_space<vmem>>, vector<1x8x32xf32>
    %607 = vector.shape_cast %606 : vector<1x8x32xf32> to vector<8x32xf32>
    %608 = vector.shape_cast %593 : vector<8x32xf32> to vector<1x8x32xf32>
    tpu.vector_store %arg9[%c1_201, %c0_202, %c0_203], %608 {strides = array<i32>} : memref<2x8x32xf32, #tpu.memory_space<vmem>>, vector<1x8x32xf32>,
    return
  }
  func.func @transform_0(%arg0: i32) -> (i32, i32) {
    %c0_i32 = arith.constant 0 : i32
    %c0_i32_0 = arith.constant 0 : i32
    return %arg0, %c0_i32 : i32, i32
  }
  func.func @transform_1(%arg0: i32) -> (i32, i32) {
    %c0_i32 = arith.constant 0 : i32
    %c0_i32_0 = arith.constant 0 : i32
    %c0_i32_1 = arith.constant 0 : i32
    return %c0_i32, %c0_i32_0 : i32, i32
  }
  func.func @transform_2(%arg0: i32) -> (i32, i32) {
    %c0_i32 = arith.constant 0 : i32
    %c0_i32_0 = arith.constant 0 : i32
    %c0_i32_1 = arith.constant 0 : i32
    return %c0_i32, %c0_i32_0 : i32, i32
  }
  func.func @transform_3(%arg0: i32) -> (i32, i32) {
    %c0_i32 = arith.constant 0 : i32
    %c0_i32_0 = arith.constant 0 : i32
    %c0_i32_1 = arith.constant 0 : i32
    return %c0_i32, %c0_i32_0 : i32, i32
  }
  func.func @transform_4(%arg0: i32) -> (i32, i32) {
    %c0_i32 = arith.constant 0 : i32
    %c0_i32_0 = arith.constant 0 : i32
    %c0_i32_1 = arith.constant 0 : i32
    return %c0_i32, %c0_i32_0 : i32, i32
  }
  func.func @transform_5(%arg0: i32) -> (i32, i32) {
    %c0_i32 = arith.constant 0 : i32
    %c0_i32_0 = arith.constant 0 : i32
    %c0_i32_1 = arith.constant 0 : i32
    return %c0_i32, %c0_i32_0 : i32, i32
  }
  func.func @transform_6(%arg0: i32) -> (i32, i32) {
    %c0_i32 = arith.constant 0 : i32
    %c0_i32_0 = arith.constant 0 : i32
    return %arg0, %c0_i32 : i32, i32
  }
}

</mosaic_0001>

<llo_original>
// kernel: _forward_impl.1
$region0: #{_forward_impl.1}
  #allocation0 [shape = 'u32[]', space=smem, size = 0x4, offset = 0x4, fixed_abs, tag = 'smem constant byte address 0x4 - core index']
  #allocation1 [shape = 'u32[144,128]{1,0:T(1,128)}', space=vmem, size = 0x12000, scoped, tag = 'internal scratch']
  #allocation2 [shape = 'f32[2,8,32]{2,1,0:T(8,128)}', space=vmem, size = 0x2000, scoped, tag = 'scratch operand']
  #allocation3 [shape = 'f32[2,8,32]{2,1,0:T(8,128)}', space=vmem, size = 0x2000, scoped, tag = 'scratch operand']
  %s0 = inlined_call_operand.vmem [shape: f32[128,16], index: 0, kind: input, shape index: {}]
  %s1 = inlined_call_operand.vmem [shape: bf16[16,128], index: 1, kind: input, shape index: {}]
  %s2 = inlined_call_operand.vmem [shape: bf16[32,128], index: 2, kind: input, shape index: {}]
  %s3 = inlined_call_operand.vmem [shape: f32[1,128], index: 3, kind: input, shape index: {}]
  %s4 = inlined_call_operand.vmem [shape: bf16[64,128], index: 4, kind: input, shape index: {}]
  %s5 = inlined_call_operand.vmem [shape: f32[1,128], index: 5, kind: input, shape index: {}]
  %s6 = inlined_call_operand.vmem [shape: f32[128,32], index: 6, kind: output, shape index: {}]
  %s7 = sld [smem:[#allocation0]]
  $region61: #{_forward_impl.1} parent=0
    _
  %s9 = ssub.s32 1, %s7
  %s10 = scalar_select 0, %s9, %s7
  loop: start=0, step=1, limit=4
  $region2: #{_forward_impl.1} parent=0 // loop_pre_header
    _
  $region3: #{_forward_impl.1} parent=0 // loop_header
    %s12 = sphi 0, %s16
    %p13 = scmp.ge.s32.totalorder %s12, 4
    %s22 = sphi 0, %s24
    %s25 = sphi 0, %s22
    %s26 = sphi 0, %s25
    %s42 = sphi 0, %s26
    %s46 = sphi 0, %s46
    %s48 = sphi 0, %s46
    %s49 = sphi 0, %s48
    %s63 = sphi 0, %s49
    %s67 = sphi 0, %s67
    %s69 = sphi 0, %s67
    %s70 = sphi 0, %s69
    %s84 = sphi 0, %s70
    %s88 = sphi 0, %s88
    %s90 = sphi 0, %s88
    %s91 = sphi 0, %s90
    %s105 = sphi 0, %s91
    %s109 = sphi 0, %s109
    %s111 = sphi 0, %s109
    %s112 = sphi 0, %s111
    %s126 = sphi 0, %s112
    %s130 = sphi 0, %s130
    %s132 = sphi 0, %s130
    %s133 = sphi 0, %s132
    %s147 = sphi 0, %s133
    %s153 = sphi 0, %s155
    %s156 = sphi 0, %s153
    %s157 = sphi 0, %s156
    %s173 = sphi 0, %s157
  $region4: #{_forward_impl.1} parent=0 // loop_header_branch
    %15 = sbr.rel (%p13) target = $region8
  $region5: #{_forward_impl.1} parent=0 // loop_body
    %s17 = ssub.s32 %s12, 1
    %s18 = ssub.s32 %s12, 2
    %s19 = sadd.s32 %s12, 1
    %s20 = ssub.s32 %s12, %s19
    %p21 = scmp.eq.s32.totalorder %s20, 0
    %s23 = sadd.s32 %s22, 1
    %s24 = scalar_select %p21, %s22, %s23
    %p27 = pneg %p21
    %p28 = scmp.eq.s32.totalorder %s12, 1
    %p29 = por %p27, %p28
    %p30 = scmp.ne.s32.totalorder %s22, %s25
    %p31 = scmp.eq.s32.totalorder %s12, 0
    %p32 = por %p30, %p31
    %p33 = scmp.ne.s32.totalorder %s22, %s25
    %p34 = scmp.eq.s32.totalorder %s17, 1
    %p35 = por %p33, %p34
    %p36 = scmp.ne.s32.totalorder %s25, %s26
    %p37 = scmp.eq.s32.totalorder %s17, 0
    %p38 = por %p36, %p37
    %p39 = scmp.ne.s32.totalorder %s25, %s26
    %p40 = scmp.eq.s32.totalorder %s18, 1
    %p41 = por %p39, %p40
    %p43 = scmp.ne.s32.totalorder %s26, %s42
    %p44 = scmp.eq.s32.totalorder %s18, 0
    %p45 = por %p43, %p44
    %s47 = sadd.s32 %s46, 1
    %p50 = scmp.eq.s32.totalorder %s12, 1
    %p51 = scmp.ne.s32.totalorder %s46, %s48
    %p52 = scmp.eq.s32.totalorder %s12, 0
    %p53 = por %p51, %p52
    %p54 = scmp.ne.s32.totalorder %s46, %s48
    %p55 = scmp.eq.s32.totalorder %s17, 1
    %p56 = por %p54, %p55
    %p57 = scmp.ne.s32.totalorder %s48, %s49
    %p58 = scmp.eq.s32.totalorder %s17, 0
    %p59 = por %p57, %p58
    %p60 = scmp.ne.s32.totalorder %s48, %s49
    %p61 = scmp.eq.s32.totalorder %s18, 1
    %p62 = por %p60, %p61
    %p64 = scmp.ne.s32.totalorder %s49, %s63
    %p65 = scmp.eq.s32.totalorder %s18, 0
    %p66 = por %p64, %p65
    %s68 = sadd.s32 %s67, 1
    %p71 = scmp.eq.s32.totalorder %s12, 1
    %p72 = scmp.ne.s32.totalorder %s67, %s69
    %p73 = scmp.eq.s32.totalorder %s12, 0
    %p74 = por %p72, %p73
    %p75 = scmp.ne.s32.totalorder %s67, %s69
    %p76 = scmp.eq.s32.totalorder %s17, 1
    %p77 = por %p75, %p76
    %p78 = scmp.ne.s32.totalorder %s69, %s70
    %p79 = scmp.eq.s32.totalorder %s17, 0
    %p80 = por %p78, %p79
    %p81 = scmp.ne.s32.totalorder %s69, %s70
    %p82 = scmp.eq.s32.totalorder %s18, 1
    %p83 = por %p81, %p82
    %p85 = scmp.ne.s32.totalorder %s70, %s84
    %p86 = scmp.eq.s32.totalorder %s18, 0
    %p87 = por %p85, %p86
    %s89 = sadd.s32 %s88, 1
    %p92 = scmp.eq.s32.totalorder %s12, 1
    %p93 = scmp.ne.s32.totalorder %s88, %s90
    %p94 = scmp.eq.s32.totalorder %s12, 0
    %p95 = por %p93, %p94
    %p96 = scmp.ne.s32.totalorder %s88, %s90
    %p97 = scmp.eq.s32.totalorder %s17, 1
    %p98 = por %p96, %p97
    %p99 = scmp.ne.s32.totalorder %s90, %s91
    %p100 = scmp.eq.s32.totalorder %s17, 0
    %p101 = por %p99, %p100
    %p102 = scmp.ne.s32.totalorder %s90, %s91
    %p103 = scmp.eq.s32.totalorder %s18, 1
    %p104 = por %p102, %p103
    %p106 = scmp.ne.s32.totalorder %s91, %s105
    %p107 = scmp.eq.s32.totalorder %s18, 0
    %p108 = por %p106, %p107
    %s110 = sadd.s32 %s109, 1
    %p113 = scmp.eq.s32.totalorder %s12, 1
    %p114 = scmp.ne.s32.totalorder %s109, %s111
    %p115 = scmp.eq.s32.totalorder %s12, 0
    %p116 = por %p114, %p115
    %p117 = scmp.ne.s32.totalorder %s109, %s111
    %p118 = scmp.eq.s32.totalorder %s17, 1
    %p119 = por %p117, %p118
    %p120 = scmp.ne.s32.totalorder %s111, %s112
    %p121 = scmp.eq.s32.totalorder %s17, 0
    %p122 = por %p120, %p121
    %p123 = scmp.ne.s32.totalorder %s111, %s112
    %p124 = scmp.eq.s32.totalorder %s18, 1
    %p125 = por %p123, %p124
    %p127 = scmp.ne.s32.totalorder %s112, %s126
    %p128 = scmp.eq.s32.totalorder %s18, 0
    %p129 = por %p127, %p128
    %s131 = sadd.s32 %s130, 1
    %p134 = scmp.eq.s32.totalorder %s12, 1
    %p135 = scmp.ne.s32.totalorder %s130, %s132
    %p136 = scmp.eq.s32.totalorder %s12, 0
    %p137 = por %p135, %p136
    %p138 = scmp.ne.s32.totalorder %s130, %s132
    %p139 = scmp.eq.s32.totalorder %s17, 1
    %p140 = por %p138, %p139
    %p141 = scmp.ne.s32.totalorder %s132, %s133
    %p142 = scmp.eq.s32.totalorder %s17, 0
    %p143 = por %p141, %p142
    %p144 = scmp.ne.s32.totalorder %s132, %s133
    %p145 = scmp.eq.s32.totalorder %s18, 1
    %p146 = por %p144, %p145
    %p148 = scmp.ne.s32.totalorder %s133, %s147
    %p149 = scmp.eq.s32.totalorder %s18, 0
    %p150 = por %p148, %p149
    %s151 = ssub.s32 %s12, %s19
    %p152 = scmp.eq.s32.totalorder %s151, 0
    %s154 = sadd.s32 %s153, 1
    %s155 = scalar_select %p152, %s153, %s154
    %p158 = pneg %p152
    %p159 = scmp.eq.s32.totalorder %s12, 1
    %p160 = por %p158, %p159
    %p161 = scmp.ne.s32.totalorder %s153, %s156
    %p162 = scmp.eq.s32.totalorder %s12, 0
    %p163 = por %p161, %p162
    %p164 = scmp.ne.s32.totalorder %s153, %s156
    %p165 = scmp.eq.s32.totalorder %s17, 1
    %p166 = por %p164, %p165
    %p167 = scmp.ne.s32.totalorder %s156, %s157
    %p168 = scmp.eq.s32.totalorder %s17, 0
    %p169 = por %p167, %p168
    %p170 = scmp.ne.s32.totalorder %s156, %s157
    %p171 = scmp.eq.s32.totalorder %s18, 1
    %p172 = por %p170, %p171
    %p174 = scmp.ne.s32.totalorder %s157, %s173
    %p175 = scmp.eq.s32.totalorder %s18, 0
    %p176 = por %p174, %p175
    %p177 = scmp.le.s32.totalorder 1, %s12
    %p178 = scmp.lt.s32.totalorder %s12, 3
    %p179 = pnand %p177, %p178
    %p180 = pneg %p179
    // Predicated region
    $region9: #{_forward_impl.1} parent=5 // pred_check
      _
    $region10: #{_forward_impl.1} parent=5 // pred_check_branch
      %182 = sbr.rel (%p179) target = $region12
    $region11: #{_forward_impl.1} parent=5 // pred_region
      %s183 = ssub.s32 %s12, 1
      // Predicated region
      $region13: #{_forward_impl.1} parent=11 // pred_check
        %p184 = pneg %p59
      $region14: #{_forward_impl.1} parent=11 // pred_check_branch
        %186 = sbr.rel (%p184) target = $region16
      $region15: #{_forward_impl.1} parent=11 // pred_region
        _
      $region16: #{_forward_impl.1} parent=11 // pred_fallthru
        _
      // Predicated region
      $region17: #{_forward_impl.1} parent=11 // pred_check
        %p187 = pneg %p80
      $region18: #{_forward_impl.1} parent=11 // pred_check_branch
        %189 = sbr.rel (%p187) target = $region20
      $region19: #{_forward_impl.1} parent=11 // pred_region
        _
      $region20: #{_forward_impl.1} parent=11 // pred_fallthru
        _
      // Predicated region
      $region21: #{_forward_impl.1} parent=11 // pred_check
        %p190 = pneg %p101
      $region22: #{_forward_impl.1} parent=11 // pred_check_branch
        %192 = sbr.rel (%p190) target = $region24
      $region23: #{_forward_impl.1} parent=11 // pred_region
        _
      $region24: #{_forward_impl.1} parent=11 // pred_fallthru
        _
      // Predicated region
      $region25: #{_forward_impl.1} parent=11 // pred_check
        %p193 = pneg %p122
      $region26: #{_forward_impl.1} parent=11 // pred_check_branch
        %195 = sbr.rel (%p193) target = $region28
      $region27: #{_forward_impl.1} parent=11 // pred_region
        _
      $region28: #{_forward_impl.1} parent=11 // pred_fallthru
        _
      // Predicated region
      $region29: #{_forward_impl.1} parent=11 // pred_check
        %p196 = pneg %p143
      $region30: #{_forward_impl.1} parent=11 // pred_check_branch
        %198 = sbr.rel (%p196) target = $region32
      $region31: #{_forward_impl.1} parent=11 // pred_region
        _
      $region32: #{_forward_impl.1} parent=11 // pred_fallthru
        _
    $region12: #{_forward_impl.1} parent=5 // pred_fallthru
      _
    %p199 = scmp.lt.s32.totalorder %s12, 2
    // Predicated region
    $region33: #{_forward_impl.1} parent=5 // pred_check
      %p200 = pneg %p199
    $region34: #{_forward_impl.1} parent=5 // pred_check_branch
      %202 = sbr.rel (%p200) target = $region36
    $region35: #{_forward_impl.1} parent=5 // pred_region
      // Predicated region
      $region37: #{_forward_impl.1} parent=35 // pred_check
        %p203 = pneg %p32
      $region38: #{_forward_impl.1} parent=35 // pred_check_branch
        %205 = sbr.rel (%p203) target = $region40
      $region39: #{_forward_impl.1} parent=35 // pred_region
        %s206 = smul.u32 8, %s12
        %p207 = scmp.lt.s32.totalorder %s206, 15
        %s208 = scalar_select %p207, %s206, 15
        %s209 = smul.addr %s208, 8
        %s210 = scalar_lea.vmem %s0, %s209
        %s211 = smul.u32 8, %s12
      $region40: #{_forward_impl.1} parent=35 // pred_fallthru
        _
    $region36: #{_forward_impl.1} parent=5 // pred_fallthru
      _
    %p212 = scmp.le.s32.totalorder 1, %s12
    %p213 = scmp.lt.s32.totalorder %s12, 3
    %p214 = pnand %p212, %p213
    %p215 = pneg %p214
    // Predicated region
    $region41: #{_forward_impl.1} parent=5 // pred_check
      _
    $region42: #{_forward_impl.1} parent=5 // pred_check_branch
      %217 = sbr.rel (%p214) target = $region44
    $region43: #{_forward_impl.1} parent=5 // pred_region
      %s218 = ssub.s32 %s12, 1
      %s219 = smul.u32 8, %s17
      %p220 = scmp.lt.s32.totalorder %s219, 15
      %s221 = scalar_select %p220, %s219, 15
      %s222 = smul.addr %s221, 8
      %s223 = scalar_lea.vmem %s0, %s222
      %p224 = pneg %p38
      %p225 = pneg %p35
      %p226 = pneg %p59
      %p227 = pneg %p56
      %p228 = pneg %p80
      %p229 = pneg %p77
      %p230 = pneg %p101
      %p231 = pneg %p98
      %p232 = pneg %p122
      %p233 = pneg %p119
      %p234 = pneg %p143
      %p235 = pneg %p140
      %p236 = pneg %p169
      %p237 = pneg %p166
      %s238 = smul.u32 8, %s17
      %p239 = scmp.lt.s32.totalorder %s238, 15
      %s240 = scalar_select %p239, %s238, 15
      %s241 = smul.addr %s240, 8
      %s242 = scalar_lea.vmem %s6, %s241
      %s243 = smul.u32 8, %s17
      %p244 = scmp.lt.s32.totalorder %s243, 15
      %s245 = scalar_select %p244, %s243, 15
      %s246 = smul.addr %s245, 8
      %s247 = scalar_lea.vmem %s0, %s246
      %s248 = smul.u32 8, %s17
      %s249 = smul.u32 8, %s17
      %p250 = scmp.lt.s32.totalorder %s249, 15
      %s251 = scalar_select %p250, %s249, 15
      %s252 = smul.addr %s251, 8
      %s253 = scalar_lea.vmem %s6, %s252
      %s254 = smul.u32 8, %s17
      %p256 = scmp.eq.s32.totalorder %s17, 0
      // Predicated region
      $region45: #{_forward_impl.1} parent=43 // pred_check
        %p257 = pneg %p256
      $region46: #{_forward_impl.1} parent=43 // pred_check_branch
        %259 = sbr.rel (%p257) target = $region48
      $region47: #{_forward_impl.1} parent=43 // pred_region
        %vm260 = vcmask 261120
        %261 = vst.msk [vmem:[#allocation2] sm:$0xff] %vm260, 0.0
        %262 = vst.msk [vmem:[#allocation2 + $0x8] sm:$0xff] %vm260, 0.0
        %263 = vst.msk [vmem:[#allocation3] sm:$0xff] %vm260, 0.0
        %264 = vst.msk [vmem:[#allocation3 + $0x8] sm:$0xff] %vm260, 0.0
      $region48: #{_forward_impl.1} parent=43 // pred_fallthru
        _
      %v265 = vld [vmem:[%s247] sm:$0xff]
      %v266 = vld [vmem:[%s247 + $0x8] sm:$0xff]
      %v267 = vld [vmem:[%s247 + $0x10] sm:$0xff]
      %v268 = vld [vmem:[%s247 + $0x18] sm:$0xff]
      %v269 = vld [vmem:[%s247 + $0x20] sm:$0xff]
      %v270 = vld [vmem:[%s247 + $0x28] sm:$0xff]
      %v271 = vld [vmem:[%s247 + $0x30] sm:$0xff]
      %v272 = vld [vmem:[%s247 + $0x38] sm:$0xff]
      %v273 = vpack.c.bf16 %v266, %v265
      %v274 = vpack.c.bf16 %v268, %v267
      %v275 = vpack.c.bf16 %v270, %v269
      %v276 = vpack.c.bf16 %v272, %v271
      %v277 = vld [vmem:[%s1] sm:$0xf]
      %v278 = vld [vmem:[%s1 + $0x4] sm:$0xf]
      %v279 = vld [vmem:[%s3] sm:$0x1]
      %v281 = vlaneseq
      %v282 = vshrl.u32 %v281, 7
      %v283 = vsub.s32 0, %v282
      %v284 = vrot.slane %v279, %v283
      %v288 = vunpack.c.l.b16 %v277
      %v289 = vunpack.c.l.b16 %v278
      %v290 = vpack.c.b16 %v289, %v288
      %vm292 = vcmask 130048
      %v294 = vsel %vm292, %v273, 0
      %v297 = vsel %vm292, %v274, 0
      %v300 = vsel %vm292, %v275, 0
      %v303 = vsel %vm292, %v276, 0
      %305 = vmatprep.subr.bf16.mxu0 0
      %306 = vmatpush1.bf16.msra.mxu0 0
      %307 = vmatprep.subr.bf16.mxu0 0
      %308 = vmatpush1.bf16.msra.mxu0 0
      %309 = vmatprep.subr.bf16.mxu0 0
      %310 = vmatpush1.bf16.msra.mxu0 0
      %311 = vmatprep.subr.bf16.mxu0 0
      %312 = vmatpush1.bf16.msra.mxu0 0
      %313 = vmatprep.subr.bf16.mxu0 0
      %314 = vmatpush1.bf16.msra.mxu0 0
      %315 = vmatprep.subr.bf16.mxu0 0
      %316 = vmatpush1.bf16.msra.mxu0 0
      %317 = vmatprep.subr.bf16.mxu0 0
      %318 = vmatpush1.bf16.msra.mxu0 0
      %319 = vmatprep.subr.bf16.mxu0 0
      %320 = vmatpush1.bf16.msra.mxu0 %v290
      %321 = vmatprep.subr.bf16.mxu0 0
      %322 = vmatpush2.bf16.msra.mxu0 0
      %323 = vmatprep.subr.bf16.mxu0 0
      %324 = vmatpush2.bf16.msra.mxu0 0
      %325 = vmatprep.subr.bf16.mxu0 0
      %326 = vmatpush2.bf16.msra.mxu0 0
      %327 = vmatprep.subr.bf16.mxu0 0
      %328 = vmatpush2.bf16.msra.mxu0 0
      %329 = vmatprep.subr.bf16.mxu0 0
      %330 = vmatpush2.bf16.msra.mxu0 0
      %331 = vmatprep.subr.bf16.mxu0 0
      %332 = vmatpush2.bf16.msra.mxu0 0
      %333 = vmatprep.subr.bf16.mxu0 0
      %334 = vmatpush2.bf16.msra.mxu0 0
      %335 = vmatprep.subr.bf16.mxu0 0
      %336 = vmatpush2.bf16.msra.mxu0 0
      %337 = vmatprep.mubr.bf16.mxu0 0
      %338 = vmatmul.mubr.bf16.gmra.mxu0 %v294
      %v339 = vpop.f32.mrf.mxu0
      %v340 = vadd.f32 %v284, %v339
      %v341 = vpop.f32.mrf.mxu0
      %v342 = vpop.f32.mrf.mxu0
      %v343 = vadd.f32 %v284, %v342
      %v344 = vpop.f32.mrf.mxu0
      %345 = vmatprep.mubr.bf16.mxu0 0
      %346 = vmatmul.mubr.bf16.gmra.mxu0 %v297
      %v347 = vpop.f32.mrf.mxu0
      %v348 = vadd.f32 %v284, %v347
      %v349 = vpop.f32.mrf.mxu0
      %v350 = vpop.f32.mrf.mxu0
      %v351 = vadd.f32 %v284, %v350
      %v352 = vpop.f32.mrf.mxu0
      %353 = vmatprep.mubr.bf16.mxu0 0
      %354 = vmatmul.mubr.bf16.gmra.mxu0 %v300
      %v355 = vpop.f32.mrf.mxu0
      %v356 = vadd.f32 %v284, %v355
      %v357 = vpop.f32.mrf.mxu0
      %v358 = vpop.f32.mrf.mxu0
      %v359 = vadd.f32 %v284, %v358
      %v360 = vpop.f32.mrf.mxu0
      %361 = vmatprep.mubr.bf16.mxu0 0
      %362 = vmatmul.mubr.bf16.gmra.mxu0 %v303
      %v363 = vpop.f32.mrf.mxu0
      %v364 = vadd.f32 %v284, %v363
      %v365 = vpop.f32.mrf.mxu0
      %v366 = vpop.f32.mrf.mxu0
      %v367 = vadd.f32 %v284, %v366
      %v368 = vpop.f32.mrf.mxu0
      %369 = vdwg.mxu0
      %v370 = vld [vmem:[%s2] sm:$0xf]
      %v371 = vld [vmem:[%s2 + $0x4] sm:$0xf]
      %v372 = vld [vmem:[%s2 + $0x8] sm:$0xf]
      %v373 = vld [vmem:[%s2 + $0xc] sm:$0xf]
      %v374 = vld [vmem:[%s4] sm:$0xf]
      %v375 = vld [vmem:[%s4 + $0x4] sm:$0xf]
      %v376 = vld [vmem:[%s4 + $0x8] sm:$0xf]
      %v377 = vld [vmem:[%s4 + $0xc] sm:$0xf]
      %v378 = vld [vmem:[%s4 + $0x10] sm:$0xf]
      %v379 = vld [vmem:[%s4 + $0x14] sm:$0xf]
      %v380 = vld [vmem:[%s4 + $0x18] sm:$0xf]
      %v381 = vld [vmem:[%s4 + $0x1c] sm:$0xf]
      %v382 = vld [vmem:[%s5] sm:$0x1]
      %v383 = vld [vmem:[#allocation2] sm:$0xff]
      %s384 = scalar_lea.vmem [#allocation2], 8
      %v385 = vld [vmem:[%s384] sm:$0xff]
      %v386 = vld [vmem:[#allocation3] sm:$0xff]
      %s387 = scalar_lea.vmem [#allocation3], 8
      %v388 = vld [vmem:[%s387] sm:$0xff]
      %v389 = vpack.c.bf16 %v383, %v383
      %v394 = vunpack.c.l.b16 %v370
      %v395 = vunpack.c.l.b16 %v371
      %v396 = vunpack.c.l.b16 %v372
      %v397 = vunpack.c.l.b16 %v373
      %v398 = vpack.c.b16 %v395, %v394
      %v399 = vpack.c.b16 %v397, %v396
      %vm402 = vcmask 261120
      %v404 = vsel %vm402, %v389, 0
      %406 = vmatprep.subr.bf16.mxu0 0
      %407 = vmatpush1.bf16.msra.mxu0 0
      %408 = vmatprep.subr.bf16.mxu0 0
      %409 = vmatpush1.bf16.msra.mxu0 0
      %410 = vmatprep.subr.bf16.mxu0 0
      %411 = vmatpush1.bf16.msra.mxu0 0
      %412 = vmatprep.subr.bf16.mxu0 0
      %413 = vmatpush1.bf16.msra.mxu0 0
      %414 = vmatprep.subr.bf16.mxu0 0
      %415 = vmatpush1.bf16.msra.mxu0 0
      %416 = vmatprep.subr.bf16.mxu0 0
      %417 = vmatpush1.bf16.msra.mxu0 0
      %418 = vmatprep.subr.bf16.mxu0 0
      %419 = vmatpush1.bf16.msra.mxu0 %v399
      %420 = vmatprep.subr.bf16.mxu0 0
      %421 = vmatpush1.bf16.msra.mxu0 %v398
      %422 = vmatprep.subr.bf16.mxu0 0
      %423 = vmatpush2.bf16.msra.mxu0 0
      %424 = vmatprep.subr.bf16.mxu0 0
      %425 = vmatpush2.bf16.msra.mxu0 0
      %426 = vmatprep.subr.bf16.mxu0 0
      %427 = vmatpush2.bf16.msra.mxu0 0
      %428 = vmatprep.subr.bf16.mxu0 0
      %429 = vmatpush2.bf16.msra.mxu0 0
      %430 = vmatprep.subr.bf16.mxu0 0
      %431 = vmatpush2.bf16.msra.mxu0 0
      %432 = vmatprep.subr.bf16.mxu0 0
      %433 = vmatpush2.bf16.msra.mxu0 0
      %434 = vmatprep.subr.bf16.mxu0 0
      %435 = vmatpush2.bf16.msra.mxu0 0
      %436 = vmatprep.subr.bf16.mxu0 0
      %437 = vmatpush2.bf16.msra.mxu0 0
      %438 = vmatprep.mubr.bf16.mxu0 0
      %439 = vmatmul.mubr.bf16.gmra.mxu0 %v404
      %v440 = vpop.f32.mrf.mxu0
      %v441 = vadd.f32 0.0, %v440
      %v442 = vpop.f32.mrf.mxu0
      %v443 = vpop.f32.mrf.mxu0
      %v444 = vpop.f32.mrf.mxu0
      %445 = vdwg.mxu0
      %v446 = vadd.f32 %v340, %v441
      %v447 = vmul.f32 %v446, 0.5
      %v448 = vtanh.pop %v447
      %v449 = vadd.f32 %v448, 1.0
      %v450 = vmul.f32 %v449, 0.5
      %v451 = vtanh.pop %v446
      %453 = vrot.lane.b32.xlu0 %v386, 32
      %v454 = vpop.permute.xlu0 %453
      %v456 = vmul.f32 %v450, %v454
      %458 = vrot.lane.b32.xlu0 %v451, 64
      %v459 = vpop.permute.xlu0 %458
      %v461 = vmul.f32 %v450, %v459
      %463 = vrot.lane.b32.xlu0 %v461, 32
      %v464 = vpop.permute.xlu0 %463
      %v466 = vadd.f32 %v456, %v464
      %v467 = vtanh.pop %v466
      %469 = vrot.lane.b32.xlu0 %v467, 64
      %v470 = vpop.permute.xlu0 %469
      %v472 = vmul.f32 %v450, %v470
      %474 = vrot.lane.b32.xlu0 %v472, 32
      %v475 = vpop.permute.xlu0 %474
      %478 = vrot.lane.b32.xlu0 %v385, 32
      %v479 = vpop.permute.xlu0 %478
      %v481 = vsel %vm402, %v475, %v479
      %v482 = vpack.c.bf16 %v481, %v481
      %v484 = vlaneseq
      %v485 = vshrl.u32 %v484, 7
      %v486 = vsub.s32 0, %v485
      %v487 = vrot.slane %v382, %v486
      %v497 = vunpack.c.l.b16 %v374
      %v498 = vunpack.c.l.b16 %v375
      %v499 = vunpack.c.l.b16 %v376
      %v500 = vunpack.c.l.b16 %v377
      %v501 = vunpack.c.l.b16 %v378
      %v502 = vunpack.c.l.b16 %v379
      %v503 = vunpack.c.l.b16 %v380
      %v504 = vunpack.c.l.b16 %v381
      %v505 = vpack.c.b16 %v498, %v497
      %v506 = vpack.c.b16 %v500, %v499
      %v507 = vpack.c.b16 %v502, %v501
      %v508 = vpack.c.b16 %v504, %v503
      %vm513 = vcmask 523264
      %v515 = vsel %vm513, %v482, 0
      %517 = vmatprep.subr.bf16.mxu0 0
      %518 = vmatpush1.bf16.msra.mxu0 0
      %519 = vmatprep.subr.bf16.mxu0 0
      %520 = vmatpush1.bf16.msra.mxu0 0
      %521 = vmatprep.subr.bf16.mxu0 0
      %522 = vmatpush1.bf16.msra.mxu0 0
      %523 = vmatprep.subr.bf16.mxu0 0
      %524 = vmatpush1.bf16.msra.mxu0 0
      %525 = vmatprep.subr.bf16.mxu0 0
      %526 = vmatpush1.bf16.msra.mxu0 %v508
      %527 = vmatprep.subr.bf16.mxu0 0
      %528 = vmatpush1.bf16.msra.mxu0 %v507
      %529 = vmatprep.subr.bf16.mxu0 0
      %530 = vmatpush1.bf16.msra.mxu0 %v506
      %531 = vmatprep.subr.bf16.mxu0 0
      %532 = vmatpush1.bf16.msra.mxu0 %v505
      %533 = vmatprep.subr.bf16.mxu0 0
      %534 = vmatpush2.bf16.msra.mxu0 0
      %535 = vmatprep.subr.bf16.mxu0 0
      %536 = vmatpush2.bf16.msra.mxu0 0
      %537 = vmatprep.subr.bf16.mxu0 0
      %538 = vmatpush2.bf16.msra.mxu0 0
      %539 = vmatprep.subr.bf16.mxu0 0
      %540 = vmatpush2.bf16.msra.mxu0 0
      %541 = vmatprep.subr.bf16.mxu0 0
      %542 = vmatpush2.bf16.msra.mxu0 0
      %543 = vmatprep.subr.bf16.mxu0 0
      %544 = vmatpush2.bf16.msra.mxu0 0
      %545 = vmatprep.subr.bf16.mxu0 0
      %546 = vmatpush2.bf16.msra.mxu0 0
      %547 = vmatprep.subr.bf16.mxu0 0
      %548 = vmatpush2.bf16.msra.mxu0 0
      %549 = vmatprep.mubr.bf16.mxu0 0
      %550 = vmatmul.mubr.bf16.gmra.mxu0 %v515
      %v551 = vpop.f32.mrf.mxu0
      %v552 = vadd.f32 %v487, %v551
      %v553 = vpop.f32.mrf.mxu0
      %v554 = vpop.f32.mrf.mxu0
      %v555 = vpop.f32.mrf.mxu0
      %556 = vdwg.mxu0
      %v557 = vmul.f32 %v552, 0.5
      %v558 = vtanh.pop %v557
      %v559 = vadd.f32 %v558, 1.0
      %v560 = vmul.f32 %v559, 0.5
      %v561 = vtanh.pop %v552
      %563 = vrot.lane.b32.xlu0 %v388, 32
      %v564 = vpop.permute.xlu0 %563
      %v566 = vmul.f32 %v560, %v564
      %568 = vrot.lane.b32.xlu0 %v561, 64
      %v569 = vpop.permute.xlu0 %568
      %v571 = vmul.f32 %v560, %v569
      %573 = vrot.lane.b32.xlu0 %v571, 32
      %v574 = vpop.permute.xlu0 %573
      %v576 = vadd.f32 %v566, %v574
      %v577 = vtanh.pop %v576
      %579 = vrot.lane.b32.xlu0 %v577, 64
      %v580 = vpop.permute.xlu0 %579
      %v582 = vmul.f32 %v560, %v580
      %584 = vrot.lane.b32.xlu0 %v582, 32
      %v585 = vpop.permute.xlu0 %584
      %587 = vst.msk [vmem:[%s253] sm:$0xff] %vm402, %v585
      %v588 = vpack.c.bf16 %v472, %v472
      %590 = vrot.lane.b32.xlu0 %v588, 32
      %v591 = vpop.permute.xlu0 %590
      %v593 = vsel %vm402, %v591, 0
      %595 = vmatprep.subr.bf16.mxu0 0
      %596 = vmatpush1.bf16.msra.mxu0 0
      %597 = vmatprep.subr.bf16.mxu0 0
      %598 = vmatpush1.bf16.msra.mxu0 0
      %599 = vmatprep.subr.bf16.mxu0 0
      %600 = vmatpush1.bf16.msra.mxu0 0
      %601 = vmatprep.subr.bf16.mxu0 0
      %602 = vmatpush1.bf16.msra.mxu0 0
      %603 = vmatprep.subr.bf16.mxu0 0
      %604 = vmatpush1.bf16.msra.mxu0 0
      %605 = vmatprep.subr.bf16.mxu0 0
      %606 = vmatpush1.bf16.msra.mxu0 0
      %607 = vmatprep.subr.bf16.mxu0 0
      %608 = vmatpush1.bf16.msra.mxu0 %v399
      %609 = vmatprep.subr.bf16.mxu0 0
      %610 = vmatpush1.bf16.msra.mxu0 %v398
      %611 = vmatprep.subr.bf16.mxu0 0
      %612 = vmatpush2.bf16.msra.mxu0 0
      %613 = vmatprep.subr.bf16.mxu0 0
      %614 = vmatpush2.bf16.msra.mxu0 0
      %615 = vmatprep.subr.bf16.mxu0 0
      %616 = vmatpush2.bf16.msra.mxu0 0
      %617 = vmatprep.subr.bf16.mxu0 0
      %618 = vmatpush2.bf16.msra.mxu0 0
      %619 = vmatprep.subr.bf16.mxu0 0
      %620 = vmatpush2.bf16.msra.mxu0 0
      %621 = vmatprep.subr.bf16.mxu0 0
      %622 = vmatpush2.bf16.msra.mxu0 0
      %623 = vmatprep.subr.bf16.mxu0 0
      %624 = vmatpush2.bf16.msra.mxu0 0
      %625 = vmatprep.subr.bf16.mxu0 0
      %626 = vmatpush2.bf16.msra.mxu0 0
      %627 = vmatprep.mubr.bf16.mxu0 0
      %628 = vmatmul.mubr.bf16.gmra.mxu0 %v593
      %v629 = vpop.f32.mrf.mxu0
      %v630 = vadd.f32 0.0, %v629
      %v631 = vpop.f32.mrf.mxu0
      %v632 = vpop.f32.mrf.mxu0
      %v633 = vpop.f32.mrf.mxu0
      %634 = vdwg.mxu0
      %v635 = vadd.f32 %v343, %v630
      %v636 = vmul.f32 %v635, 0.5
      %v637 = vtanh.pop %v636
      %v638 = vadd.f32 %v637, 1.0
      %v639 = vmul.f32 %v638, 0.5
      %v640 = vtanh.pop %v635
      %v641 = vmul.f32 %v639, %v466
      %643 = vrot.lane.b32.xlu0 %v640, 64
      %v644 = vpop.permute.xlu0 %643
      %v646 = vmul.f32 %v639, %v644
      %648 = vrot.lane.b32.xlu0 %v646, 32
      %v649 = vpop.permute.xlu0 %648
      %v651 = vadd.f32 %v641, %v649
      %v652 = vtanh.pop %v651
      %654 = vrot.lane.b32.xlu0 %v652, 64
      %v655 = vpop.permute.xlu0 %654
      %v657 = vmul.f32 %v639, %v655
      %659 = vrot.lane.b32.xlu0 %v657, 32
      %v660 = vpop.permute.xlu0 %659
      %662 = vrot.lane.b32.xlu0 %v582, 64
      %v663 = vpop.permute.xlu0 %662
      %v665 = vsel %vm402, %v660, %v663
      %v666 = vpack.c.bf16 %v665, %v665
      %v668 = vsel %vm513, %v666, 0
      %670 = vmatprep.subr.bf16.mxu0 0
      %671 = vmatpush1.bf16.msra.mxu0 0
      %672 = vmatprep.subr.bf16.mxu0 0
      %673 = vmatpush1.bf16.msra.mxu0 0
      %674 = vmatprep.subr.bf16.mxu0 0
      %675 = vmatpush1.bf16.msra.mxu0 0
      %676 = vmatprep.subr.bf16.mxu0 0
      %677 = vmatpush1.bf16.msra.mxu0 0
      %678 = vmatprep.subr.bf16.mxu0 0
      %679 = vmatpush1.bf16.msra.mxu0 %v508
      %680 = vmatprep.subr.bf16.mxu0 0
      %681 = vmatpush1.bf16.msra.mxu0 %v507
      %682 = vmatprep.subr.bf16.mxu0 0
      %683 = vmatpush1.bf16.msra.mxu0 %v506
      %684 = vmatprep.subr.bf16.mxu0 0
      %685 = vmatpush1.bf16.msra.mxu0 %v505
      %686 = vmatprep.subr.bf16.mxu0 0
      %687 = vmatpush2.bf16.msra.mxu0 0
      %688 = vmatprep.subr.bf16.mxu0 0
      %689 = vmatpush2.bf16.msra.mxu0 0
      %690 = vmatprep.subr.bf16.mxu0 0
      %691 = vmatpush2.bf16.msra.mxu0 0
      %692 = vmatprep.subr.bf16.mxu0 0
      %693 = vmatpush2.bf16.msra.mxu0 0
      %694 = vmatprep.subr.bf16.mxu0 0
      %695 = vmatpush2.bf16.msra.mxu0 0
      %696 = vmatprep.subr.bf16.mxu0 0
      %697 = vmatpush2.bf16.msra.mxu0 0
      %698 = vmatprep.subr.bf16.mxu0 0
      %699 = vmatpush2.bf16.msra.mxu0 0
      %700 = vmatprep.subr.bf16.mxu0 0
      %701 = vmatpush2.bf16.msra.mxu0 0
      %702 = vmatprep.mubr.bf16.mxu0 0
      %703 = vmatmul.mubr.bf16.gmra.mxu0 %v668
      %v704 = vpop.f32.mrf.mxu0
      %v705 = vadd.f32 %v487, %v704
      %v706 = vpop.f32.mrf.mxu0
      %v707 = vpop.f32.mrf.mxu0
      %v708 = vpop.f32.mrf.mxu0
      %709 = vdwg.mxu0
      %v710 = vmul.f32 %v705, 0.5
      %v711 = vtanh.pop %v710
      %v712 = vadd.f32 %v711, 1.0
      %v713 = vmul.f32 %v712, 0.5
      %v714 = vtanh.pop %v705
      %v715 = vmul.f32 %v713, %v576
      %717 = vrot.lane.b32.xlu0 %v714, 64
      %v718 = vpop.permute.xlu0 %717
      %v720 = vmul.f32 %v713, %v718
      %722 = vrot.lane.b32.xlu0 %v720, 32
      %v723 = vpop.permute.xlu0 %722
      %v725 = vadd.f32 %v715, %v723
      %v726 = vtanh.pop %v725
      %728 = vrot.lane.b32.xlu0 %v726, 64
      %v729 = vpop.permute.xlu0 %728
      %v731 = vmul.f32 %v713, %v729
      %733 = vrot.lane.b32.xlu0 %v731, 32
      %v734 = vpop.permute.xlu0 %733
      %736 = vst.msk [vmem:[%s253 + $0x8] sm:$0xff] %vm402, %v734
      %v737 = vpack.c.bf16 %v657, %v657
      %739 = vrot.lane.b32.xlu0 %v737, 32
      %v740 = vpop.permute.xlu0 %739
      %v742 = vsel %vm402, %v740, 0
      %744 = vmatprep.subr.bf16.mxu0 0
      %745 = vmatpush1.bf16.msra.mxu0 0
      %746 = vmatprep.subr.bf16.mxu0 0
      %747 = vmatpush1.bf16.msra.mxu0 0
      %748 = vmatprep.subr.bf16.mxu0 0
      %749 = vmatpush1.bf16.msra.mxu0 0
      %750 = vmatprep.subr.bf16.mxu0 0
      %751 = vmatpush1.bf16.msra.mxu0 0
      %752 = vmatprep.subr.bf16.mxu0 0
      %753 = vmatpush1.bf16.msra.mxu0 0
      %754 = vmatprep.subr.bf16.mxu0 0
      %755 = vmatpush1.bf16.msra.mxu0 0
      %756 = vmatprep.subr.bf16.mxu0 0
      %757 = vmatpush1.bf16.msra.mxu0 %v399
      %758 = vmatprep.subr.bf16.mxu0 0
      %759 = vmatpush1.bf16.msra.mxu0 %v398
      %760 = vmatprep.subr.bf16.mxu0 0
      %761 = vmatpush2.bf16.msra.mxu0 0
      %762 = vmatprep.subr.bf16.mxu0 0
      %763 = vmatpush2.bf16.msra.mxu0 0
      %764 = vmatprep.subr.bf16.mxu0 0
      %765 = vmatpush2.bf16.msra.mxu0 0
      %766 = vmatprep.subr.bf16.mxu0 0
      %767 = vmatpush2.bf16.msra.mxu0 0
      %768 = vmatprep.subr.bf16.mxu0 0
      %769 = vmatpush2.bf16.msra.mxu0 0
      %770 = vmatprep.subr.bf16.mxu0 0
      %771 = vmatpush2.bf16.msra.mxu0 0
      %772 = vmatprep.subr.bf16.mxu0 0
      %773 = vmatpush2.bf16.msra.mxu0 0
      %774 = vmatprep.subr.bf16.mxu0 0
      %775 = vmatpush2.bf16.msra.mxu0 0
      %776 = vmatprep.mubr.bf16.mxu0 0
      %777 = vmatmul.mubr.bf16.gmra.mxu0 %v742
      %v778 = vpop.f32.mrf.mxu0
      %v779 = vadd.f32 0.0, %v778
      %v780 = vpop.f32.mrf.mxu0
      %v781 = vpop.f32.mrf.mxu0
      %v782 = vpop.f32.mrf.mxu0
      %783 = vdwg.mxu0
      %v784 = vadd.f32 %v348, %v779
      %v785 = vmul.f32 %v784, 0.5
      %v786 = vtanh.pop %v785
      %v787 = vadd.f32 %v786, 1.0
      %v788 = vmul.f32 %v787, 0.5
      %v789 = vtanh.pop %v784
      %v790 = vmul.f32 %v788, %v651
      %792 = vrot.lane.b32.xlu0 %v789, 64
      %v793 = vpop.permute.xlu0 %792
      %v795 = vmul.f32 %v788, %v793
      %797 = vrot.lane.b32.xlu0 %v795, 32
      %v798 = vpop.permute.xlu0 %797
      %v800 = vadd.f32 %v790, %v798
      %v801 = vtanh.pop %v800
      %803 = vrot.lane.b32.xlu0 %v801, 64
      %v804 = vpop.permute.xlu0 %803
      %v806 = vmul.f32 %v788, %v804
      %808 = vrot.lane.b32.xlu0 %v806, 32
      %v809 = vpop.permute.xlu0 %808
      %811 = vrot.lane.b32.xlu0 %v731, 64
      %v812 = vpop.permute.xlu0 %811
      %v814 = vsel %vm402, %v809, %v812
      %v815 = vpack.c.bf16 %v814, %v814
      %v817 = vsel %vm513, %v815, 0
      %819 = vmatprep.subr.bf16.mxu0 0
      %820 = vmatpush1.bf16.msra.mxu0 0
      %821 = vmatprep.subr.bf16.mxu0 0
      %822 = vmatpush1.bf16.msra.mxu0 0
      %823 = vmatprep.subr.bf16.mxu0 0
      %824 = vmatpush1.bf16.msra.mxu0 0
      %825 = vmatprep.subr.bf16.mxu0 0
      %826 = vmatpush1.bf16.msra.mxu0 0
      %827 = vmatprep.subr.bf16.mxu0 0
      %828 = vmatpush1.bf16.msra.mxu0 %v508
      %829 = vmatprep.subr.bf16.mxu0 0
      %830 = vmatpush1.bf16.msra.mxu0 %v507
      %831 = vmatprep.subr.bf16.mxu0 0
      %832 = vmatpush1.bf16.msra.mxu0 %v506
      %833 = vmatprep.subr.bf16.mxu0 0
      %834 = vmatpush1.bf16.msra.mxu0 %v505
      %835 = vmatprep.subr.bf16.mxu0 0
      %836 = vmatpush2.bf16.msra.mxu0 0
      %837 = vmatprep.subr.bf16.mxu0 0
      %838 = vmatpush2.bf16.msra.mxu0 0
      %839 = vmatprep.subr.bf16.mxu0 0
      %840 = vmatpush2.bf16.msra.mxu0 0
      %841 = vmatprep.subr.bf16.mxu0 0
      %842 = vmatpush2.bf16.msra.mxu0 0
      %843 = vmatprep.subr.bf16.mxu0 0
      %844 = vmatpush2.bf16.msra.mxu0 0
      %845 = vmatprep.subr.bf16.mxu0 0
      %846 = vmatpush2.bf16.msra.mxu0 0
      %847 = vmatprep.subr.bf16.mxu0 0
      %848 = vmatpush2.bf16.msra.mxu0 0
      %849 = vmatprep.subr.bf16.mxu0 0
      %850 = vmatpush2.bf16.msra.mxu0 0
      %851 = vmatprep.mubr.bf16.mxu0 0
      %852 = vmatmul.mubr.bf16.gmra.mxu0 %v817
      %v853 = vpop.f32.mrf.mxu0
      %v854 = vadd.f32 %v487, %v853
      %v855 = vpop.f32.mrf.mxu0
      %v856 = vpop.f32.mrf.mxu0
      %v857 = vpop.f32.mrf.mxu0
      %858 = vdwg.mxu0
      %v859 = vmul.f32 %v854, 0.5
      %v860 = vtanh.pop %v859
      %v861 = vadd.f32 %v860, 1.0
      %v862 = vmul.f32 %v861, 0.5
      %v863 = vtanh.pop %v854
      %v864 = vmul.f32 %v862, %v725
      %866 = vrot.lane.b32.xlu0 %v863, 64
      %v867 = vpop.permute.xlu0 %866
      %v869 = vmul.f32 %v862, %v867
      %871 = vrot.lane.b32.xlu0 %v869, 32
      %v872 = vpop.permute.xlu0 %871
      %v874 = vadd.f32 %v864, %v872
      %v875 = vtanh.pop %v874
      %877 = vrot.lane.b32.xlu0 %v875, 64
      %v878 = vpop.permute.xlu0 %877
      %v880 = vmul.f32 %v862, %v878
      %882 = vrot.lane.b32.xlu0 %v880, 32
      %v883 = vpop.permute.xlu0 %882
      %885 = vst.msk [vmem:[%s253 + $0x10] sm:$0xff] %vm402, %v883
      %v886 = vpack.c.bf16 %v806, %v806
      %888 = vrot.lane.b32.xlu0 %v886, 32
      %v889 = vpop.permute.xlu0 %888
      %v891 = vsel %vm402, %v889, 0
      %893 = vmatprep.subr.bf16.mxu0 0
      %894 = vmatpush1.bf16.msra.mxu0 0
      %895 = vmatprep.subr.bf16.mxu0 0
      %896 = vmatpush1.bf16.msra.mxu0 0
      %897 = vmatprep.subr.bf16.mxu0 0
      %898 = vmatpush1.bf16.msra.mxu0 0
      %899 = vmatprep.subr.bf16.mxu0 0
      %900 = vmatpush1.bf16.msra.mxu0 0
      %901 = vmatprep.subr.bf16.mxu0 0
      %902 = vmatpush1.bf16.msra.mxu0 0
      %903 = vmatprep.subr.bf16.mxu0 0
      %904 = vmatpush1.bf16.msra.mxu0 0
      %905 = vmatprep.subr.bf16.mxu0 0
      %906 = vmatpush1.bf16.msra.mxu0 %v399
      %907 = vmatprep.subr.bf16.mxu0 0
      %908 = vmatpush1.bf16.msra.mxu0 %v398
      %909 = vmatprep.subr.bf16.mxu0 0
      %910 = vmatpush2.bf16.msra.mxu0 0
      %911 = vmatprep.subr.bf16.mxu0 0
      %912 = vmatpush2.bf16.msra.mxu0 0
      %913 = vmatprep.subr.bf16.mxu0 0
      %914 = vmatpush2.bf16.msra.mxu0 0
      %915 = vmatprep.subr.bf16.mxu0 0
      %916 = vmatpush2.bf16.msra.mxu0 0
      %917 = vmatprep.subr.bf16.mxu0 0
      %918 = vmatpush2.bf16.msra.mxu0 0
      %919 = vmatprep.subr.bf16.mxu0 0
      %920 = vmatpush2.bf16.msra.mxu0 0
      %921 = vmatprep.subr.bf16.mxu0 0
      %922 = vmatpush2.bf16.msra.mxu0 0
      %923 = vmatprep.subr.bf16.mxu0 0
      %924 = vmatpush2.bf16.msra.mxu0 0
      %925 = vmatprep.mubr.bf16.mxu0 0
      %926 = vmatmul.mubr.bf16.gmra.mxu0 %v891
      %v927 = vpop.f32.mrf.mxu0
      %v928 = vadd.f32 0.0, %v927
      %v929 = vpop.f32.mrf.mxu0
      %v930 = vpop.f32.mrf.mxu0
      %v931 = vpop.f32.mrf.mxu0
      %932 = vdwg.mxu0
      %v933 = vadd.f32 %v351, %v928
      %v934 = vmul.f32 %v933, 0.5
      %v935 = vtanh.pop %v934
      %v936 = vadd.f32 %v935, 1.0
      %v937 = vmul.f32 %v936, 0.5
      %v938 = vtanh.pop %v933
      %v939 = vmul.f32 %v937, %v800
      %941 = vrot.lane.b32.xlu0 %v938, 64
      %v942 = vpop.permute.xlu0 %941
      %v944 = vmul.f32 %v937, %v942
      %946 = vrot.lane.b32.xlu0 %v944, 32
      %v947 = vpop.permute.xlu0 %946
      %v949 = vadd.f32 %v939, %v947
      %v950 = vtanh.pop %v949
      %952 = vrot.lane.b32.xlu0 %v950, 64
      %v953 = vpop.permute.xlu0 %952
      %v955 = vmul.f32 %v937, %v953
      %957 = vrot.lane.b32.xlu0 %v955, 32
      %v958 = vpop.permute.xlu0 %957
      %960 = vrot.lane.b32.xlu0 %v880, 64
      %v961 = vpop.permute.xlu0 %960
      %v963 = vsel %vm402, %v958, %v961
      %v964 = vpack.c.bf16 %v963, %v963
      %v966 = vsel %vm513, %v964, 0
      %968 = vmatprep.subr.bf16.mxu0 0
      %969 = vmatpush1.bf16.msra.mxu0 0
      %970 = vmatprep.subr.bf16.mxu0 0
      %971 = vmatpush1.bf16.msra.mxu0 0
      %972 = vmatprep.subr.bf16.mxu0 0
      %973 = vmatpush1.bf16.msra.mxu0 0
      %974 = vmatprep.subr.bf16.mxu0 0
      %975 = vmatpush1.bf16.msra.mxu0 0
      %976 = vmatprep.subr.bf16.mxu0 0
      %977 = vmatpush1.bf16.msra.mxu0 %v508
      %978 = vmatprep.subr.bf16.mxu0 0
      %979 = vmatpush1.bf16.msra.mxu0 %v507
      %980 = vmatprep.subr.bf16.mxu0 0
      %981 = vmatpush1.bf16.msra.mxu0 %v506
      %982 = vmatprep.subr.bf16.mxu0 0
      %983 = vmatpush1.bf16.msra.mxu0 %v505
      %984 = vmatprep.subr.bf16.mxu0 0
      %985 = vmatpush2.bf16.msra.mxu0 0
      %986 = vmatprep.subr.bf16.mxu0 0
      %987 = vmatpush2.bf16.msra.mxu0 0
      %988 = vmatprep.subr.bf16.mxu0 0
      %989 = vmatpush2.bf16.msra.mxu0 0
      %990 = vmatprep.subr.bf16.mxu0 0
      %991 = vmatpush2.bf16.msra.mxu0 0
      %992 = vmatprep.subr.bf16.mxu0 0
      %993 = vmatpush2.bf16.msra.mxu0 0
      %994 = vmatprep.subr.bf16.mxu0 0
      %995 = vmatpush2.bf16.msra.mxu0 0
      %996 = vmatprep.subr.bf16.mxu0 0
      %997 = vmatpush2.bf16.msra.mxu0 0
      %998 = vmatprep.subr.bf16.mxu0 0
      %999 = vmatpush2.bf16.msra.mxu0 0
      %1000 = vmatprep.mubr.bf16.mxu0 0
      %1001 = vmatmul.mubr.bf16.gmra.mxu0 %v966
      %v1002 = vpop.f32.mrf.mxu0
      %v1003 = vadd.f32 %v487, %v1002
      %v1004 = vpop.f32.mrf.mxu0
      %v1005 = vpop.f32.mrf.mxu0
      %v1006 = vpop.f32.mrf.mxu0
      %1007 = vdwg.mxu0
      %v1008 = vmul.f32 %v1003, 0.5
      %v1009 = vtanh.pop %v1008
      %v1010 = vadd.f32 %v1009, 1.0
      %v1011 = vmul.f32 %v1010, 0.5
      %v1012 = vtanh.pop %v1003
      %v1013 = vmul.f32 %v1011, %v874
      %1015 = vrot.lane.b32.xlu0 %v1012, 64
      %v1016 = vpop.permute.xlu0 %1015
      %v1018 = vmul.f32 %v1011, %v1016
      %1020 = vrot.lane.b32.xlu0 %v1018, 32
      %v1021 = vpop.permute.xlu0 %1020
      %v1023 = vadd.f32 %v1013, %v1021
      %v1024 = vtanh.pop %v1023
      %1026 = vrot.lane.b32.xlu0 %v1024, 64
      %v1027 = vpop.permute.xlu0 %1026
      %v1029 = vmul.f32 %v1011, %v1027
      %1031 = vrot.lane.b32.xlu0 %v1029, 32
      %v1032 = vpop.permute.xlu0 %1031
      %1034 = vst.msk [vmem:[%s253 + $0x18] sm:$0xff] %vm402, %v1032
      %v1035 = vpack.c.bf16 %v955, %v955
      %1037 = vrot.lane.b32.xlu0 %v1035, 32
      %v1038 = vpop.permute.xlu0 %1037
      %v1040 = vsel %vm402, %v1038, 0
      %1042 = vmatprep.subr.bf16.mxu0 0
      %1043 = vmatpush1.bf16.msra.mxu0 0
      %1044 = vmatprep.subr.bf16.mxu0 0
      %1045 = vmatpush1.bf16.msra.mxu0 0
      %1046 = vmatprep.subr.bf16.mxu0 0
      %1047 = vmatpush1.bf16.msra.mxu0 0
      %1048 = vmatprep.subr.bf16.mxu0 0
      %1049 = vmatpush1.bf16.msra.mxu0 0
      %1050 = vmatprep.subr.bf16.mxu0 0
      %1051 = vmatpush1.bf16.msra.mxu0 0
      %1052 = vmatprep.subr.bf16.mxu0 0
      %1053 = vmatpush1.bf16.msra.mxu0 0
      %1054 = vmatprep.subr.bf16.mxu0 0
      %1055 = vmatpush1.bf16.msra.mxu0 %v399
      %1056 = vmatprep.subr.bf16.mxu0 0
      %1057 = vmatpush1.bf16.msra.mxu0 %v398
      %1058 = vmatprep.subr.bf16.mxu0 0
      %1059 = vmatpush2.bf16.msra.mxu0 0
      %1060 = vmatprep.subr.bf16.mxu0 0
      %1061 = vmatpush2.bf16.msra.mxu0 0
      %1062 = vmatprep.subr.bf16.mxu0 0
      %1063 = vmatpush2.bf16.msra.mxu0 0
      %1064 = vmatprep.subr.bf16.mxu0 0
      %1065 = vmatpush2.bf16.msra.mxu0 0
      %1066 = vmatprep.subr.bf16.mxu0 0
      %1067 = vmatpush2.bf16.msra.mxu0 0
      %1068 = vmatprep.subr.bf16.mxu0 0
      %1069 = vmatpush2.bf16.msra.mxu0 0
      %1070 = vmatprep.subr.bf16.mxu0 0
      %1071 = vmatpush2.bf16.msra.mxu0 0
      %1072 = vmatprep.subr.bf16.mxu0 0
      %1073 = vmatpush2.bf16.msra.mxu0 0
      %1074 = vmatprep.mubr.bf16.mxu0 0
      %1075 = vmatmul.mubr.bf16.gmra.mxu0 %v1040
      %v1076 = vpop.f32.mrf.mxu0
      %v1077 = vadd.f32 0.0, %v1076
      %v1078 = vpop.f32.mrf.mxu0
      %v1079 = vpop.f32.mrf.mxu0
      %v1080 = vpop.f32.mrf.mxu0
      %1081 = vdwg.mxu0
      %v1082 = vadd.f32 %v356, %v1077
      %v1083 = vmul.f32 %v1082, 0.5
      %v1084 = vtanh.pop %v1083
      %v1085 = vadd.f32 %v1084, 1.0
      %v1086 = vmul.f32 %v1085, 0.5
      %v1087 = vtanh.pop %v1082
      %v1088 = vmul.f32 %v1086, %v949
      %1090 = vrot.lane.b32.xlu0 %v1087, 64
      %v1091 = vpop.permute.xlu0 %1090
      %v1093 = vmul.f32 %v1086, %v1091
      %1095 = vrot.lane.b32.xlu0 %v1093, 32
      %v1096 = vpop.permute.xlu0 %1095
      %v1098 = vadd.f32 %v1088, %v1096
      %v1099 = vtanh.pop %v1098
      %1101 = vrot.lane.b32.xlu0 %v1099, 64
      %v1102 = vpop.permute.xlu0 %1101
      %v1104 = vmul.f32 %v1086, %v1102
      %1106 = vrot.lane.b32.xlu0 %v1104, 32
      %v1107 = vpop.permute.xlu0 %1106
      %1109 = vrot.lane.b32.xlu0 %v1029, 64
      %v1110 = vpop.permute.xlu0 %1109
      %v1112 = vsel %vm402, %v1107, %v1110
      %v1113 = vpack.c.bf16 %v1112, %v1112
      %v1115 = vsel %vm513, %v1113, 0
      %1117 = vmatprep.subr.bf16.mxu0 0
      %1118 = vmatpush1.bf16.msra.mxu0 0
      %1119 = vmatprep.subr.bf16.mxu0 0
      %1120 = vmatpush1.bf16.msra.mxu0 0
      %1121 = vmatprep.subr.bf16.mxu0 0
      %1122 = vmatpush1.bf16.msra.mxu0 0
      %1123 = vmatprep.subr.bf16.mxu0 0
      %1124 = vmatpush1.bf16.msra.mxu0 0
      %1125 = vmatprep.subr.bf16.mxu0 0
      %1126 = vmatpush1.bf16.msra.mxu0 %v508
      %1127 = vmatprep.subr.bf16.mxu0 0
      %1128 = vmatpush1.bf16.msra.mxu0 %v507
      %1129 = vmatprep.subr.bf16.mxu0 0
      %1130 = vmatpush1.bf16.msra.mxu0 %v506
      %1131 = vmatprep.subr.bf16.mxu0 0
      %1132 = vmatpush1.bf16.msra.mxu0 %v505
      %1133 = vmatprep.subr.bf16.mxu0 0
      %1134 = vmatpush2.bf16.msra.mxu0 0
      %1135 = vmatprep.subr.bf16.mxu0 0
      %1136 = vmatpush2.bf16.msra.mxu0 0
      %1137 = vmatprep.subr.bf16.mxu0 0
      %1138 = vmatpush2.bf16.msra.mxu0 0
      %1139 = vmatprep.subr.bf16.mxu0 0
      %1140 = vmatpush2.bf16.msra.mxu0 0
      %1141 = vmatprep.subr.bf16.mxu0 0
      %1142 = vmatpush2.bf16.msra.mxu0 0
      %1143 = vmatprep.subr.bf16.mxu0 0
      %1144 = vmatpush2.bf16.msra.mxu0 0
      %1145 = vmatprep.subr.bf16.mxu0 0
      %1146 = vmatpush2.bf16.msra.mxu0 0
      %1147 = vmatprep.subr.bf16.mxu0 0
      %1148 = vmatpush2.bf16.msra.mxu0 0
      %1149 = vmatprep.mubr.bf16.mxu0 0
      %1150 = vmatmul.mubr.bf16.gmra.mxu0 %v1115
      %v1151 = vpop.f32.mrf.mxu0
      %v1152 = vadd.f32 %v487, %v1151
      %v1153 = vpop.f32.mrf.mxu0
      %v1154 = vpop.f32.mrf.mxu0
      %v1155 = vpop.f32.mrf.mxu0
      %1156 = vdwg.mxu0
      %v1157 = vmul.f32 %v1152, 0.5
      %v1158 = vtanh.pop %v1157
      %v1159 = vadd.f32 %v1158, 1.0
      %v1160 = vmul.f32 %v1159, 0.5
      %v1161 = vtanh.pop %v1152
      %v1162 = vmul.f32 %v1160, %v1023
      %1164 = vrot.lane.b32.xlu0 %v1161, 64
      %v1165 = vpop.permute.xlu0 %1164
      %v1167 = vmul.f32 %v1160, %v1165
      %1169 = vrot.lane.b32.xlu0 %v1167, 32
      %v1170 = vpop.permute.xlu0 %1169
      %v1172 = vadd.f32 %v1162, %v1170
      %v1173 = vtanh.pop %v1172
      %1175 = vrot.lane.b32.xlu0 %v1173, 64
      %v1176 = vpop.permute.xlu0 %1175
      %v1178 = vmul.f32 %v1160, %v1176
      %1180 = vrot.lane.b32.xlu0 %v1178, 32
      %v1181 = vpop.permute.xlu0 %1180
      %1183 = vst.msk [vmem:[%s253 + $0x20] sm:$0xff] %vm402, %v1181
      %v1184 = vpack.c.bf16 %v1104, %v1104
      %1186 = vrot.lane.b32.xlu0 %v1184, 32
      %v1187 = vpop.permute.xlu0 %1186
      %v1189 = vsel %vm402, %v1187, 0
      %1191 = vmatprep.subr.bf16.mxu0 0
      %1192 = vmatpush1.bf16.msra.mxu0 0
      %1193 = vmatprep.subr.bf16.mxu0 0
      %1194 = vmatpush1.bf16.msra.mxu0 0
      %1195 = vmatprep.subr.bf16.mxu0 0
      %1196 = vmatpush1.bf16.msra.mxu0 0
      %1197 = vmatprep.subr.bf16.mxu0 0
      %1198 = vmatpush1.bf16.msra.mxu0 0
      %1199 = vmatprep.subr.bf16.mxu0 0
      %1200 = vmatpush1.bf16.msra.mxu0 0
      %1201 = vmatprep.subr.bf16.mxu0 0
      %1202 = vmatpush1.bf16.msra.mxu0 0
      %1203 = vmatprep.subr.bf16.mxu0 0
      %1204 = vmatpush1.bf16.msra.mxu0 %v399
      %1205 = vmatprep.subr.bf16.mxu0 0
      %1206 = vmatpush1.bf16.msra.mxu0 %v398
      %1207 = vmatprep.subr.bf16.mxu0 0
      %1208 = vmatpush2.bf16.msra.mxu0 0
      %1209 = vmatprep.subr.bf16.mxu0 0
      %1210 = vmatpush2.bf16.msra.mxu0 0
      %1211 = vmatprep.subr.bf16.mxu0 0
      %1212 = vmatpush2.bf16.msra.mxu0 0
      %1213 = vmatprep.subr.bf16.mxu0 0
      %1214 = vmatpush2.bf16.msra.mxu0 0
      %1215 = vmatprep.subr.bf16.mxu0 0
      %1216 = vmatpush2.bf16.msra.mxu0 0
      %1217 = vmatprep.subr.bf16.mxu0 0
      %1218 = vmatpush2.bf16.msra.mxu0 0
      %1219 = vmatprep.subr.bf16.mxu0 0
      %1220 = vmatpush2.bf16.msra.mxu0 0
      %1221 = vmatprep.subr.bf16.mxu0 0
      %1222 = vmatpush2.bf16.msra.mxu0 0
      %1223 = vmatprep.mubr.bf16.mxu0 0
      %1224 = vmatmul.mubr.bf16.gmra.mxu0 %v1189
      %v1225 = vpop.f32.mrf.mxu0
      %v1226 = vadd.f32 0.0, %v1225
      %v1227 = vpop.f32.mrf.mxu0
      %v1228 = vpop.f32.mrf.mxu0
      %v1229 = vpop.f32.mrf.mxu0
      %1230 = vdwg.mxu0
      %v1231 = vadd.f32 %v359, %v1226
      %v1232 = vmul.f32 %v1231, 0.5
      %v1233 = vtanh.pop %v1232
      %v1234 = vadd.f32 %v1233, 1.0
      %v1235 = vmul.f32 %v1234, 0.5
      %v1236 = vtanh.pop %v1231
      %v1237 = vmul.f32 %v1235, %v1098
      %1239 = vrot.lane.b32.xlu0 %v1236, 64
      %v1240 = vpop.permute.xlu0 %1239
      %v1242 = vmul.f32 %v1235, %v1240
      %1244 = vrot.lane.b32.xlu0 %v1242, 32
      %v1245 = vpop.permute.xlu0 %1244
      %v1247 = vadd.f32 %v1237, %v1245
      %v1248 = vtanh.pop %v1247
      %1250 = vrot.lane.b32.xlu0 %v1248, 64
      %v1251 = vpop.permute.xlu0 %1250
      %v1253 = vmul.f32 %v1235, %v1251
      %1255 = vrot.lane.b32.xlu0 %v1253, 32
      %v1256 = vpop.permute.xlu0 %1255
      %1258 = vrot.lane.b32.xlu0 %v1178, 64
      %v1259 = vpop.permute.xlu0 %1258
      %v1261 = vsel %vm402, %v1256, %v1259
      %v1262 = vpack.c.bf16 %v1261, %v1261
      %v1264 = vsel %vm513, %v1262, 0
      %1266 = vmatprep.subr.bf16.mxu0 0
      %1267 = vmatpush1.bf16.msra.mxu0 0
      %1268 = vmatprep.subr.bf16.mxu0 0
      %1269 = vmatpush1.bf16.msra.mxu0 0
      %1270 = vmatprep.subr.bf16.mxu0 0
      %1271 = vmatpush1.bf16.msra.mxu0 0
      %1272 = vmatprep.subr.bf16.mxu0 0
      %1273 = vmatpush1.bf16.msra.mxu0 0
      %1274 = vmatprep.subr.bf16.mxu0 0
      %1275 = vmatpush1.bf16.msra.mxu0 %v508
      %1276 = vmatprep.subr.bf16.mxu0 0
      %1277 = vmatpush1.bf16.msra.mxu0 %v507
      %1278 = vmatprep.subr.bf16.mxu0 0
      %1279 = vmatpush1.bf16.msra.mxu0 %v506
      %1280 = vmatprep.subr.bf16.mxu0 0
      %1281 = vmatpush1.bf16.msra.mxu0 %v505
      %1282 = vmatprep.subr.bf16.mxu0 0
      %1283 = vmatpush2.bf16.msra.mxu0 0
      %1284 = vmatprep.subr.bf16.mxu0 0
      %1285 = vmatpush2.bf16.msra.mxu0 0
      %1286 = vmatprep.subr.bf16.mxu0 0
      %1287 = vmatpush2.bf16.msra.mxu0 0
      %1288 = vmatprep.subr.bf16.mxu0 0
      %1289 = vmatpush2.bf16.msra.mxu0 0
      %1290 = vmatprep.subr.bf16.mxu0 0
      %1291 = vmatpush2.bf16.msra.mxu0 0
      %1292 = vmatprep.subr.bf16.mxu0 0
      %1293 = vmatpush2.bf16.msra.mxu0 0
      %1294 = vmatprep.subr.bf16.mxu0 0
      %1295 = vmatpush2.bf16.msra.mxu0 0
      %1296 = vmatprep.subr.bf16.mxu0 0
      %1297 = vmatpush2.bf16.msra.mxu0 0
      %1298 = vmatprep.mubr.bf16.mxu0 0
      %1299 = vmatmul.mubr.bf16.gmra.mxu0 %v1264
      %v1300 = vpop.f32.mrf.mxu0
      %v1301 = vadd.f32 %v487, %v1300
      %v1302 = vpop.f32.mrf.mxu0
      %v1303 = vpop.f32.mrf.mxu0
      %v1304 = vpop.f32.mrf.mxu0
      %1305 = vdwg.mxu0
      %v1306 = vmul.f32 %v1301, 0.5
      %v1307 = vtanh.pop %v1306
      %v1308 = vadd.f32 %v1307, 1.0
      %v1309 = vmul.f32 %v1308, 0.5
      %v1310 = vtanh.pop %v1301
      %v1311 = vmul.f32 %v1309, %v1172
      %1313 = vrot.lane.b32.xlu0 %v1310, 64
      %v1314 = vpop.permute.xlu0 %1313
      %v1316 = vmul.f32 %v1309, %v1314
      %1318 = vrot.lane.b32.xlu0 %v1316, 32
      %v1319 = vpop.permute.xlu0 %1318
      %v1321 = vadd.f32 %v1311, %v1319
      %v1322 = vtanh.pop %v1321
      %1324 = vrot.lane.b32.xlu0 %v1322, 64
      %v1325 = vpop.permute.xlu0 %1324
      %v1327 = vmul.f32 %v1309, %v1325
      %1329 = vrot.lane.b32.xlu0 %v1327, 32
      %v1330 = vpop.permute.xlu0 %1329
      %1332 = vst.msk [vmem:[%s253 + $0x28] sm:$0xff] %vm402, %v1330
      %v1333 = vpack.c.bf16 %v1253, %v1253
      %1335 = vrot.lane.b32.xlu0 %v1333, 32
      %v1336 = vpop.permute.xlu0 %1335
      %v1338 = vsel %vm402, %v1336, 0
      %1340 = vmatprep.subr.bf16.mxu0 0
      %1341 = vmatpush1.bf16.msra.mxu0 0
      %1342 = vmatprep.subr.bf16.mxu0 0
      %1343 = vmatpush1.bf16.msra.mxu0 0
      %1344 = vmatprep.subr.bf16.mxu0 0
      %1345 = vmatpush1.bf16.msra.mxu0 0
      %1346 = vmatprep.subr.bf16.mxu0 0
      %1347 = vmatpush1.bf16.msra.mxu0 0
      %1348 = vmatprep.subr.bf16.mxu0 0
      %1349 = vmatpush1.bf16.msra.mxu0 0
      %1350 = vmatprep.subr.bf16.mxu0 0
      %1351 = vmatpush1.bf16.msra.mxu0 0
      %1352 = vmatprep.subr.bf16.mxu0 0
      %1353 = vmatpush1.bf16.msra.mxu0 %v399
      %1354 = vmatprep.subr.bf16.mxu0 0
      %1355 = vmatpush1.bf16.msra.mxu0 %v398
      %1356 = vmatprep.subr.bf16.mxu0 0
      %1357 = vmatpush2.bf16.msra.mxu0 0
      %1358 = vmatprep.subr.bf16.mxu0 0
      %1359 = vmatpush2.bf16.msra.mxu0 0
      %1360 = vmatprep.subr.bf16.mxu0 0
      %1361 = vmatpush2.bf16.msra.mxu0 0
      %1362 = vmatprep.subr.bf16.mxu0 0
      %1363 = vmatpush2.bf16.msra.mxu0 0
      %1364 = vmatprep.subr.bf16.mxu0 0
      %1365 = vmatpush2.bf16.msra.mxu0 0
      %1366 = vmatprep.subr.bf16.mxu0 0
      %1367 = vmatpush2.bf16.msra.mxu0 0
      %1368 = vmatprep.subr.bf16.mxu0 0
      %1369 = vmatpush2.bf16.msra.mxu0 0
      %1370 = vmatprep.subr.bf16.mxu0 0
      %1371 = vmatpush2.bf16.msra.mxu0 0
      %1372 = vmatprep.mubr.bf16.mxu0 0
      %1373 = vmatmul.mubr.bf16.gmra.mxu0 %v1338
      %v1374 = vpop.f32.mrf.mxu0
      %v1375 = vadd.f32 0.0, %v1374
      %v1376 = vpop.f32.mrf.mxu0
      %v1377 = vpop.f32.mrf.mxu0
      %v1378 = vpop.f32.mrf.mxu0
      %1379 = vdwg.mxu0
      %v1380 = vadd.f32 %v364, %v1375
      %v1381 = vmul.f32 %v1380, 0.5
      %v1382 = vtanh.pop %v1381
      %v1383 = vadd.f32 %v1382, 1.0
      %v1384 = vmul.f32 %v1383, 0.5
      %v1385 = vtanh.pop %v1380
      %v1386 = vmul.f32 %v1384, %v1247
      %1388 = vrot.lane.b32.xlu0 %v1385, 64
      %v1389 = vpop.permute.xlu0 %1388
      %v1391 = vmul.f32 %v1384, %v1389
      %1393 = vrot.lane.b32.xlu0 %v1391, 32
      %v1394 = vpop.permute.xlu0 %1393
      %v1396 = vadd.f32 %v1386, %v1394
      %v1397 = vtanh.pop %v1396
      %1399 = vrot.lane.b32.xlu0 %v1397, 64
      %v1400 = vpop.permute.xlu0 %1399
      %v1402 = vmul.f32 %v1384, %v1400
      %1404 = vrot.lane.b32.xlu0 %v1402, 32
      %v1405 = vpop.permute.xlu0 %1404
      %1407 = vrot.lane.b32.xlu0 %v1327, 64
      %v1408 = vpop.permute.xlu0 %1407
      %v1410 = vsel %vm402, %v1405, %v1408
      %v1411 = vpack.c.bf16 %v1410, %v1410
      %v1413 = vsel %vm513, %v1411, 0
      %1415 = vmatprep.subr.bf16.mxu0 0
      %1416 = vmatpush1.bf16.msra.mxu0 0
      %1417 = vmatprep.subr.bf16.mxu0 0
      %1418 = vmatpush1.bf16.msra.mxu0 0
      %1419 = vmatprep.subr.bf16.mxu0 0
      %1420 = vmatpush1.bf16.msra.mxu0 0
      %1421 = vmatprep.subr.bf16.mxu0 0
      %1422 = vmatpush1.bf16.msra.mxu0 0
      %1423 = vmatprep.subr.bf16.mxu0 0
      %1424 = vmatpush1.bf16.msra.mxu0 %v508
      %1425 = vmatprep.subr.bf16.mxu0 0
      %1426 = vmatpush1.bf16.msra.mxu0 %v507
      %1427 = vmatprep.subr.bf16.mxu0 0
      %1428 = vmatpush1.bf16.msra.mxu0 %v506
      %1429 = vmatprep.subr.bf16.mxu0 0
      %1430 = vmatpush1.bf16.msra.mxu0 %v505
      %1431 = vmatprep.subr.bf16.mxu0 0
      %1432 = vmatpush2.bf16.msra.mxu0 0
      %1433 = vmatprep.subr.bf16.mxu0 0
      %1434 = vmatpush2.bf16.msra.mxu0 0
      %1435 = vmatprep.subr.bf16.mxu0 0
      %1436 = vmatpush2.bf16.msra.mxu0 0
      %1437 = vmatprep.subr.bf16.mxu0 0
      %1438 = vmatpush2.bf16.msra.mxu0 0
      %1439 = vmatprep.subr.bf16.mxu0 0
      %1440 = vmatpush2.bf16.msra.mxu0 0
      %1441 = vmatprep.subr.bf16.mxu0 0
      %1442 = vmatpush2.bf16.msra.mxu0 0
      %1443 = vmatprep.subr.bf16.mxu0 0
      %1444 = vmatpush2.bf16.msra.mxu0 0
      %1445 = vmatprep.subr.bf16.mxu0 0
      %1446 = vmatpush2.bf16.msra.mxu0 0
      %1447 = vmatprep.mubr.bf16.mxu0 0
      %1448 = vmatmul.mubr.bf16.gmra.mxu0 %v1413
      %v1449 = vpop.f32.mrf.mxu0
      %v1450 = vadd.f32 %v487, %v1449
      %v1451 = vpop.f32.mrf.mxu0
      %v1452 = vpop.f32.mrf.mxu0
      %v1453 = vpop.f32.mrf.mxu0
      %1454 = vdwg.mxu0
      %v1455 = vmul.f32 %v1450, 0.5
      %v1456 = vtanh.pop %v1455
      %v1457 = vadd.f32 %v1456, 1.0
      %v1458 = vmul.f32 %v1457, 0.5
      %v1459 = vtanh.pop %v1450
      %v1460 = vmul.f32 %v1458, %v1321
      %1462 = vrot.lane.b32.xlu0 %v1459, 64
      %v1463 = vpop.permute.xlu0 %1462
      %v1465 = vmul.f32 %v1458, %v1463
      %1467 = vrot.lane.b32.xlu0 %v1465, 32
      %v1468 = vpop.permute.xlu0 %1467
      %v1470 = vadd.f32 %v1460, %v1468
      %v1471 = vtanh.pop %v1470
      %1473 = vrot.lane.b32.xlu0 %v1471, 64
      %v1474 = vpop.permute.xlu0 %1473
      %v1476 = vmul.f32 %v1458, %v1474
      %1478 = vrot.lane.b32.xlu0 %v1476, 32
      %v1479 = vpop.permute.xlu0 %1478
      %1481 = vst.msk [vmem:[%s253 + $0x30] sm:$0xff] %vm402, %v1479
      %v1482 = vpack.c.bf16 %v1402, %v1402
      %1484 = vrot.lane.b32.xlu0 %v1482, 32
      %v1485 = vpop.permute.xlu0 %1484
      %v1487 = vsel %vm402, %v1485, 0
      %1489 = vmatprep.subr.bf16.mxu0 0
      %1490 = vmatpush1.bf16.msra.mxu0 0
      %1491 = vmatprep.subr.bf16.mxu0 0
      %1492 = vmatpush1.bf16.msra.mxu0 0
      %1493 = vmatprep.subr.bf16.mxu0 0
      %1494 = vmatpush1.bf16.msra.mxu0 0
      %1495 = vmatprep.subr.bf16.mxu0 0
      %1496 = vmatpush1.bf16.msra.mxu0 0
      %1497 = vmatprep.subr.bf16.mxu0 0
      %1498 = vmatpush1.bf16.msra.mxu0 0
      %1499 = vmatprep.subr.bf16.mxu0 0
      %1500 = vmatpush1.bf16.msra.mxu0 0
      %1501 = vmatprep.subr.bf16.mxu0 0
      %1502 = vmatpush1.bf16.msra.mxu0 %v399
      %1503 = vmatprep.subr.bf16.mxu0 0
      %1504 = vmatpush1.bf16.msra.mxu0 %v398
      %1505 = vmatprep.subr.bf16.mxu0 0
      %1506 = vmatpush2.bf16.msra.mxu0 0
      %1507 = vmatprep.subr.bf16.mxu0 0
      %1508 = vmatpush2.bf16.msra.mxu0 0
      %1509 = vmatprep.subr.bf16.mxu0 0
      %1510 = vmatpush2.bf16.msra.mxu0 0
      %1511 = vmatprep.subr.bf16.mxu0 0
      %1512 = vmatpush2.bf16.msra.mxu0 0
      %1513 = vmatprep.subr.bf16.mxu0 0
      %1514 = vmatpush2.bf16.msra.mxu0 0
      %1515 = vmatprep.subr.bf16.mxu0 0
      %1516 = vmatpush2.bf16.msra.mxu0 0
      %1517 = vmatprep.subr.bf16.mxu0 0
      %1518 = vmatpush2.bf16.msra.mxu0 0
      %1519 = vmatprep.subr.bf16.mxu0 0
      %1520 = vmatpush2.bf16.msra.mxu0 0
      %1521 = vmatprep.mubr.bf16.mxu0 0
      %1522 = vmatmul.mubr.bf16.gmra.mxu0 %v1487
      %v1523 = vpop.f32.mrf.mxu0
      %v1524 = vadd.f32 0.0, %v1523
      %v1525 = vpop.f32.mrf.mxu0
      %v1526 = vpop.f32.mrf.mxu0
      %v1527 = vpop.f32.mrf.mxu0
      %1528 = vdwg.mxu0
      %v1529 = vadd.f32 %v367, %v1524
      %v1530 = vmul.f32 %v1529, 0.5
      %v1531 = vtanh.pop %v1530
      %v1532 = vadd.f32 %v1531, 1.0
      %v1533 = vmul.f32 %v1532, 0.5
      %v1534 = vtanh.pop %v1529
      %v1535 = vmul.f32 %v1533, %v1396
      %1537 = vrot.lane.b32.xlu0 %v1534, 64
      %v1538 = vpop.permute.xlu0 %1537
      %v1540 = vmul.f32 %v1533, %v1538
      %1542 = vrot.lane.b32.xlu0 %v1540, 32
      %v1543 = vpop.permute.xlu0 %1542
      %v1545 = vadd.f32 %v1535, %v1543
      %v1546 = vtanh.pop %v1545
      %1548 = vrot.lane.b32.xlu0 %v1546, 64
      %v1549 = vpop.permute.xlu0 %1548
      %v1551 = vmul.f32 %v1533, %v1549
      %1553 = vrot.lane.b32.xlu0 %v1551, 32
      %v1554 = vpop.permute.xlu0 %1553
      %1556 = vrot.lane.b32.xlu0 %v1476, 64
      %v1557 = vpop.permute.xlu0 %1556
      %v1559 = vsel %vm402, %v1554, %v1557
      %v1560 = vpack.c.bf16 %v1559, %v1559
      %v1562 = vsel %vm513, %v1560, 0
      %1564 = vmatprep.subr.bf16.mxu0 0
      %1565 = vmatpush1.bf16.msra.mxu0 0
      %1566 = vmatprep.subr.bf16.mxu0 0
      %1567 = vmatpush1.bf16.msra.mxu0 0
      %1568 = vmatprep.subr.bf16.mxu0 0
      %1569 = vmatpush1.bf16.msra.mxu0 0
      %1570 = vmatprep.subr.bf16.mxu0 0
      %1571 = vmatpush1.bf16.msra.mxu0 0
      %1572 = vmatprep.subr.bf16.mxu0 0
      %1573 = vmatpush1.bf16.msra.mxu0 %v508
      %1574 = vmatprep.subr.bf16.mxu0 0
      %1575 = vmatpush1.bf16.msra.mxu0 %v507
      %1576 = vmatprep.subr.bf16.mxu0 0
      %1577 = vmatpush1.bf16.msra.mxu0 %v506
      %1578 = vmatprep.subr.bf16.mxu0 0
      %1579 = vmatpush1.bf16.msra.mxu0 %v505
      %1580 = vmatprep.subr.bf16.mxu0 0
      %1581 = vmatpush2.bf16.msra.mxu0 0
      %1582 = vmatprep.subr.bf16.mxu0 0
      %1583 = vmatpush2.bf16.msra.mxu0 0
      %1584 = vmatprep.subr.bf16.mxu0 0
      %1585 = vmatpush2.bf16.msra.mxu0 0
      %1586 = vmatprep.subr.bf16.mxu0 0
      %1587 = vmatpush2.bf16.msra.mxu0 0
      %1588 = vmatprep.subr.bf16.mxu0 0
      %1589 = vmatpush2.bf16.msra.mxu0 0
      %1590 = vmatprep.subr.bf16.mxu0 0
      %1591 = vmatpush2.bf16.msra.mxu0 0
      %1592 = vmatprep.subr.bf16.mxu0 0
      %1593 = vmatpush2.bf16.msra.mxu0 0
      %1594 = vmatprep.subr.bf16.mxu0 0
      %1595 = vmatpush2.bf16.msra.mxu0 0
      %1596 = vmatprep.mubr.bf16.mxu0 0
      %1597 = vmatmul.mubr.bf16.gmra.mxu0 %v1562
      %v1598 = vpop.f32.mrf.mxu0
      %v1599 = vadd.f32 %v487, %v1598
      %v1600 = vpop.f32.mrf.mxu0
      %v1601 = vpop.f32.mrf.mxu0
      %v1602 = vpop.f32.mrf.mxu0
      %1603 = vdwg.mxu0
      %v1604 = vmul.f32 %v1599, 0.5
      %v1605 = vtanh.pop %v1604
      %v1606 = vadd.f32 %v1605, 1.0
      %v1607 = vmul.f32 %v1606, 0.5
      %v1608 = vtanh.pop %v1599
      %v1609 = vmul.f32 %v1607, %v1470
      %1611 = vrot.lane.b32.xlu0 %v1608, 64
      %v1612 = vpop.permute.xlu0 %1611
      %v1614 = vmul.f32 %v1607, %v1612
      %1616 = vrot.lane.b32.xlu0 %v1614, 32
      %v1617 = vpop.permute.xlu0 %1616
      %v1619 = vadd.f32 %v1609, %v1617
      %v1620 = vtanh.pop %v1619
      %1622 = vrot.lane.b32.xlu0 %v1620, 64
      %v1623 = vpop.permute.xlu0 %1622
      %v1625 = vmul.f32 %v1607, %v1623
      %1627 = vrot.lane.b32.xlu0 %v1625, 32
      %v1628 = vpop.permute.xlu0 %1627
      %1630 = vst.msk [vmem:[%s253 + $0x38] sm:$0xff] %vm402, %v1628
      %1631 = vst.msk [vmem:[#allocation2] sm:$0xff] %vm402, %v1554
      %1633 = vrot.lane.b32.xlu0 %v1545, 96
      %v1634 = vpop.permute.xlu0 %1633
      %1636 = vst.msk [vmem:[#allocation3] sm:$0xff] %vm402, %v1634
      %1637 = vst.msk [vmem:[%s384] sm:$0xff] %vm402, %v1628
      %1639 = vrot.lane.b32.xlu0 %v1619, 96
      %v1640 = vpop.permute.xlu0 %1639
      %1642 = vst.msk [vmem:[%s387] sm:$0xff] %vm402, %v1640
      %s1643 = smul.u32 8, %s17
      %p1644 = scmp.lt.s32.totalorder %s1643, 15
      %s1645 = scalar_select %p1644, %s1643, 15
      %s1646 = smul.addr %s1645, 8
      %s1647 = scalar_lea.vmem %s6, %s1646
      // Predicated region
      $region49: #{_forward_impl.1} parent=43 // pred_check
        %p1648 = pneg %p166
      $region50: #{_forward_impl.1} parent=43 // pred_check_branch
        %1650 = sbr.rel (%p1648) target = $region52
      $region51: #{_forward_impl.1} parent=43 // pred_region
        %s1651 = smul.u32 8, %s17
      $region52: #{_forward_impl.1} parent=43 // pred_fallthru
        _
    $region44: #{_forward_impl.1} parent=5 // pred_fallthru
      _
    %p1652 = scmp.le.s32.totalorder 2, %s12
    // Predicated region
    $region53: #{_forward_impl.1} parent=5 // pred_check
      %p1653 = pneg %p1652
    $region54: #{_forward_impl.1} parent=5 // pred_check_branch
      %1655 = sbr.rel (%p1653) target = $region56
    $region55: #{_forward_impl.1} parent=5 // pred_region
      %s1656 = ssub.s32 %s12, 2
      // Predicated region
      $region57: #{_forward_impl.1} parent=55 // pred_check
        %p1657 = pneg %p172
      $region58: #{_forward_impl.1} parent=55 // pred_check_branch
        %1659 = sbr.rel (%p1657) target = $region60
      $region59: #{_forward_impl.1} parent=55 // pred_region
        %s1660 = smul.u32 8, %s18
        %p1661 = scmp.lt.s32.totalorder %s1660, 15
        %s1662 = scalar_select %p1661, %s1660, 15
        %s1663 = smul.addr %s1662, 8
        %s1664 = scalar_lea.vmem %s6, %s1663
      $region60: #{_forward_impl.1} parent=55 // pred_fallthru
        _
    $region56: #{_forward_impl.1} parent=5 // pred_fallthru
      _
  $region6: #{_forward_impl.1} parent=0 // loop_footer
    %s16 = sadd.s32 1, %s12
  $region7: #{_forward_impl.1} parent=0 // loop_footer_branch
    %11 = sbr.rel target = $region3
  $region8: #{_forward_impl.1} parent=0 // loop_exit
    _

</llo_original>
